<compile_context>
chip_gen: v6e
topology: v6e:2x2x1
jax: 0.10.0
libtpu: 0.0.40
codegen_flags: <defaults>
</compile_context>

<pallas_src>
import functools

import jax
import jax.numpy as jnp
from jax.experimental import pallas as pl
from jax.experimental.pallas import tpu as pltpu


def _align8(x):
    return ((x + 7) // 8) * 8


def _param_offsets(n, f, num_heads, hidden):
    """Row offsets of each block inside the packed params slab (all 8-aligned)."""
    hn = num_heads * n
    r_w1 = 0                                   # (n+f, D)   W1.T with n zero rows
    r_as1 = _align8(r_w1 + n + f)              # (hn, D)    attn1 self, repeated
    r_an1 = _align8(r_as1 + hn)                # (hn, D)    attn1 nbr,  repeated
    r_as2 = _align8(r_an1 + hn)                # (hn, D)    attn2 self, repeated
    r_an2 = _align8(r_as2 + hn)                # (hn, D)    attn2 nbr,  repeated
    r_bc1 = _align8(r_an2 + hn)                # (hn, 1)    attn1 bias column
    r_bc2 = _align8(r_bc1 + hn)                # (hn, 1)    attn2 bias column
    r_w2 = _align8(r_bc2 + hn)                 # H blocks of (D, D), stride 8-pad
    w2_stride = _align8(hidden)
    r_misc = _align8(r_w2 + num_heads * w2_stride)   # b1 / b2 / out.w / out.b rows
    rows = r_misc + 8
    return dict(w1=r_w1, as1=r_as1, an1=r_an1, as2=r_as2, an2=r_an2,
                bc1=r_bc1, bc2=r_bc2, w2=r_w2, w2_stride=w2_stride,
                misc=r_misc, rows=rows)


def pack_gat_params(w1, b1, attn1_w, attn1_b, w2, b2, attn2_w, attn2_b,
                    out_w, out_b, *, n, f, num_heads, hidden):
    """Pack all parameters into one (rows, D) slab (see _param_offsets).

    w1:(F,D)=W1.weight.T  attn*_w:(H,2D) rows = attn head weight[0]
    w2:(H*D,D)=W2.weight.T  out_w:(D,)=out.weight[0]  out_b:(1,)
    """
    off = _param_offsets(n, f, num_heads, hidden)
    d = hidden
    hn = num_heads * n
    p = jnp.zeros((off["rows"], d), jnp.float32)
    # W1 folded for the packed [adj | feats] graph: first n rows stay zero.
    p = p.at[off["w1"] + n: off["w1"] + n + f, :].set(w1)
    rep = lambda a: jnp.repeat(a, n, axis=0)           # row hd*n+i = a[hd]
    p = p.at[off["as1"]: off["as1"] + hn, :].set(rep(attn1_w[:, :d]))
    p = p.at[off["an1"]: off["an1"] + hn, :].set(rep(attn1_w[:, d:]))
    p = p.at[off["as2"]: off["as2"] + hn, :].set(rep(attn2_w[:, :d]))
    p = p.at[off["an2"]: off["an2"] + hn, :].set(rep(attn2_w[:, d:]))
    p = p.at[off["bc1"]: off["bc1"] + hn, 0].set(jnp.repeat(attn1_b, n))
    p = p.at[off["bc2"]: off["bc2"] + hn, 0].set(jnp.repeat(attn2_b, n))
    for hd in range(num_heads):
        r = off["w2"] + hd * off["w2_stride"]
        p = p.at[r: r + d, :].set(w2[hd * d: (hd + 1) * d, :])
    p = p.at[off["misc"] + 0, :].set(b1)
    p = p.at[off["misc"] + 1, :].set(b2)
    p = p.at[off["misc"] + 2, :].set(out_w)
    p = p.at[off["misc"] + 3, 0].set(out_b[0])
    return p


def _elu(x):
    # PyTorch nn.ELU(): x if x > 0 else exp(x) - 1
    return jnp.where(x > 0.0, x, jnp.exp(jnp.minimum(x, 0.0)) - 1.0)


def _leaky_relu(x):
    # PyTorch nn.LeakyReLU() default negative_slope = 0.01
    return jnp.where(x >= 0.0, x, 0.01 * x)


def gat_kernel(graph_ref, params_ref, out_ref, *, n, f, num_heads, hidden):
    H, D, N = num_heads, hidden, n
    HN = H * N
    off = _param_offsets(n, f, num_heads, hidden)

    def rows(r0, cnt, cols=None):
        if cols is None:
            return params_ref[r0:r0 + cnt, :]
        return params_ref[r0:r0 + cnt, 0:cols]

    graph = graph_ref[...]                       # (N, N+F) = [adj | feats]
    adj = graph[:, 0:N]                          # lane-0 slice: free view
    adj_t = jnp.tile(adj, (H, 1))                # (HN, N) {0,1} edge mask
    neg_t = (adj_t - 1.0) * 1e30                 # additive mask: 0 edge, -1e30 off

    w1e = rows(off["w1"], n + f)                 # (N+F, D) (first N rows zero)
    as1 = rows(off["as1"], HN)                   # (HN, D)
    an1 = rows(off["an1"], HN)
    as2 = rows(off["as2"], HN)
    an2 = rows(off["an2"], HN)
    bc1 = rows(off["bc1"], HN, 1)                # (HN, 1)
    bc2 = rows(off["bc2"], HN, 1)
    b1 = rows(off["misc"] + 0, 1)                # (1, D)
    b2 = rows(off["misc"] + 1, 1)
    ow = rows(off["misc"] + 2, 1)                # out.weight[0]
    ob = rows(off["misc"] + 3, 1, 1)             # (1, 1) out.bias

    # h1 = W1(adj @ feats) + b1 ; feats is never sliced out: the W1 rows that
    # multiply the adj columns of the packed graph are zero.
    x0 = jnp.dot(adj, graph, preferred_element_type=jnp.float32)      # (N, N+F)
    h1 = jnp.dot(x0, w1e, preferred_element_type=jnp.float32) + b1    # (N, D)

    def attention_p(h, ht, a_self_rep, a_nbr_rep, bias_col):
        """Masked attention probabilities, heads stacked into (HN, N)."""
        hT = jnp.transpose(h)                                          # (D, N)
        # neighbor term for all heads in ONE matmul (head broadcast baked
        # into the pre-repeated parameter rows).
        nbr = jnp.dot(a_nbr_rep, hT, preferred_element_type=jnp.float32)  # (HN, N)
        # self term for all heads in ONE lane-reduce; per-head bias folded in.
        self_col = jnp.sum(ht * a_self_rep, axis=1, keepdims=True) + bias_col
        score = _leaky_relu(nbr + self_col) + neg_t
        m = jnp.max(score, axis=1, keepdims=True)
        # multiplicative {0,1} mask keeps isolated-node rows exactly all-zero.
        e = jnp.exp(score - m) * adj_t
        denom = jnp.sum(e, axis=1, keepdims=True)
        denom = jnp.where(denom == 0.0, 1.0, denom)
        return e * pl.reciprocal(denom, approx=True)                   # (HN, N)

    # ---- attention layer 1 (heads concatenated -> W2) ----
    ht1 = jnp.tile(h1, (H, 1))                                         # (HN, D)
    p1 = attention_p(h1, ht1, as1, an1, bc1)
    agg1 = jnp.dot(p1, h1, preferred_element_type=jnp.float32)         # (HN, D)
    att1 = _elu(ht1 + agg1)                                            # (HN, D)
    # Head-batched W2: accumulate H small dots in registers (no VMEM scratch,
    # no masked stores); per-head slices of att1 are 8-aligned vreg selects.
    h2 = b2
    for hd in range(H):
        w2_h = rows(off["w2"] + hd * off["w2_stride"], D)              # (D, D)
        h2 = h2 + jnp.dot(att1[hd * N:(hd + 1) * N, :], w2_h,
                          preferred_element_type=jnp.float32)          # (N, D)

    # ---- attention layer 2 (heads averaged) ----
    # mean_h (h2 + p_h @ h2) == h2 + (mean_h p_h) @ h2  -> average p first.
    ht2 = jnp.tile(h2, (H, 1))
    p2 = attention_p(h2, ht2, as2, an2, bc2)                           # (HN, N)
    p_avg = jnp.mean(p2.reshape(H, N, N), axis=0)                      # (N, N)
    h2_new = _elu(h2 + jnp.dot(p_avg, h2, preferred_element_type=jnp.float32))

    # mean over nodes, then output Linear(D, 1) as a lane reduce.
    avgd = jnp.sum(h2_new, axis=0, keepdims=True) * (1.0 / N)          # (1, D)
    result = jnp.sum(avgd * ow, axis=1, keepdims=True) + ob            # (1, 1)
    # lane-dense output block: unmasked store, wrapper reads lane 0.
    out_ref[...] = jnp.broadcast_to(result, out_ref.shape)


def gat_forward(adj, feats, params, *, num_heads, hidden):
    """Batched GAT forward. adj:(B,N,N) {0,1}, feats:(B,N,F) -> (B,) outputs."""
    B, N, _ = adj.shape
    F = feats.shape[-1]
    R, C = params.shape
    graphs = jnp.concatenate([adj, feats], axis=-1)        # (B, N, N+F)
    kernel = functools.partial(gat_kernel, n=N, f=F,
                               num_heads=num_heads, hidden=hidden)
    out = pl.pallas_call(
        kernel,
        grid=(B,),
        in_specs=[
            pl.BlockSpec((None, N, N + F), lambda b: (b, 0, 0)),
            pl.BlockSpec((R, C), lambda b: (0, 0)),        # resident, DMA'd once
        ],
        out_specs=pl.BlockSpec((None, 1, 128), lambda b: (b, 0, 0)),
        out_shape=jax.ShapeDtypeStruct((B, 1, 128), jnp.float32),
        compiler_params=pltpu.CompilerParams(
            dimension_semantics=("parallel",)),
    )(graphs, params)
    return out[:, 0, 0]                                     # (B,)


if __name__ == "__main__":
    # B = 8 graphs, N = 8 nodes, F = 16 input feats, H = 5 heads, D = 10 hidden.
    B, N, F, H, D = 8, 8, 16, 5, 10

    key = jax.random.PRNGKey(0)
    ks = jax.random.split(key, 12)

    adj = jax.random.bernoulli(ks[0], 0.4, (B, N, N)).astype(jnp.float32)
    feats = jax.random.normal(ks[1], (B, N, F), dtype=jnp.float32)

    def uinit(k, shape, fan_in):
        bound = 1.0 / (fan_in ** 0.5)
        return jax.random.uniform(k, shape, jnp.float32, -bound, bound)

    w1 = uinit(ks[2], (F, D), F)                  # W1.weight.T
    b1 = uinit(ks[3], (D,), F)                    # W1.bias
    attn1_w = uinit(ks[4], (H, 2 * D), 2 * D)     # attn1 head weights [self|nbr]
    attn1_b = uinit(ks[5], (H,), 2 * D)           # attn1 head biases
    w2 = uinit(ks[6], (H * D, D), H * D)          # W2.weight.T (head-major rows)
    b2 = uinit(ks[7], (D,), H * D)                # W2.bias
    attn2_w = uinit(ks[8], (H, 2 * D), 2 * D)     # attn2 head weights
    attn2_b = uinit(ks[9], (H,), 2 * D)           # attn2 head biases
    ow = uinit(ks[10], (D,), D)                   # out.weight[0]
    ob = uinit(ks[11], (1,), D)                   # out.bias

    params = pack_gat_params(w1, b1, attn1_w, attn1_b, w2, b2,
                             attn2_w, attn2_b, ow, ob,
                             n=N, f=F, num_heads=H, hidden=D)

    gat = jax.jit(functools.partial(gat_forward, num_heads=H, hidden=D))
    out = gat(adj, feats, params)
    jax.block_until_ready(out)
    print("KERNEL_OK")
</pallas_src>

<mosaic_0001>
module attributes {stable_mosaic.version = 11 : i64} {
  func.func @gat_kernel(%arg0: i32, %arg1: memref<1x8x24xf32, #tpu.memory_space<vmem>>, %arg2: memref<352x10xf32, #tpu.memory_space<vmem>>, %arg3: memref<1x1x128xf32, #tpu.memory_space<vmem>>) attributes {dimension_semantics = [#tpu.dimension_semantics<parallel>], iteration_bounds = array<i64: 8>, scalar_prefetch = 0 : i64, scratch_operands = 0 : i64, tpu.core_type = #tpu.core_type<tc>, window_params = [{transform_indices = @transform_0, window_bounds = array<i64: 1, 8, 24>}, {pipeline_mode = #tpu.pipeline_mode<synchronous>, transform_indices = @transform_1, window_bounds = array<i64: 352, 10>}, {transform_indices = @transform_2, window_bounds = array<i64: 1, 1, 128>}]} {
    %c0 = arith.constant 0 : index
    %c0_0 = arith.constant 0 : index
    %c0_1 = arith.constant 0 : index
    %0 = vector.load %arg1[%c0, %c0_0, %c0_1] : memref<1x8x24xf32, #tpu.memory_space<vmem>>, vector<1x8x24xf32>
    %1 = vector.shape_cast %0 : vector<1x8x24xf32> to vector<8x24xf32>
    %2 = vector.extract_strided_slice %1 {offsets = [0, 0], sizes = [8, 8], strides = [1, 1]} : vector<8x24xf32> to vector<8x8xf32>
    %3 = tpu.concatenate %2, %2, %2, %2, %2 in 0 : vector<8x8xf32>, vector<8x8xf32>, vector<8x8xf32>, vector<8x8xf32>, vector<8x8xf32> -> vector<40x8xf32>
    %cst = arith.constant 1.000000e+00 : f32
    %4 = vector.broadcast %cst : f32 to vector<40x8xf32>
    %5 = arith.subf %3, %4 : vector<40x8xf32>
    %cst_2 = arith.constant 1.000000e+30 : f32
    %6 = vector.broadcast %cst_2 : f32 to vector<40x8xf32>
    %7 = arith.mulf %5, %6 : vector<40x8xf32>
    %c0_3 = arith.constant 0 : index
    %c0_4 = arith.constant 0 : index
    %8 = vector.load %arg2[%c0_3, %c0_4] : memref<352x10xf32, #tpu.memory_space<vmem>>, vector<24x10xf32>
    %c24 = arith.constant 24 : index
    %c0_5 = arith.constant 0 : index
    %9 = vector.load %arg2[%c24, %c0_5] : memref<352x10xf32, #tpu.memory_space<vmem>>, vector<40x10xf32>
    %c64 = arith.constant 64 : index
    %c0_6 = arith.constant 0 : index
    %10 = vector.load %arg2[%c64, %c0_6] : memref<352x10xf32, #tpu.memory_space<vmem>>, vector<40x10xf32>
    %c104 = arith.constant 104 : index
    %c0_7 = arith.constant 0 : index
    %11 = vector.load %arg2[%c104, %c0_7] : memref<352x10xf32, #tpu.memory_space<vmem>>, vector<40x10xf32>
    %c144 = arith.constant 144 : index
    %c0_8 = arith.constant 0 : index
    %12 = vector.load %arg2[%c144, %c0_8] : memref<352x10xf32, #tpu.memory_space<vmem>>, vector<40x10xf32>
    %c184 = arith.constant 184 : index
    %c0_9 = arith.constant 0 : index
    %13 = vector.load %arg2[%c184, %c0_9] : memref<352x10xf32, #tpu.memory_space<vmem>>, vector<40x1xf32>
    %c224 = arith.constant 224 : index
    %c0_10 = arith.constant 0 : index
    %14 = vector.load %arg2[%c224, %c0_10] : memref<352x10xf32, #tpu.memory_space<vmem>>, vector<40x1xf32>
    %c344 = arith.constant 344 : index
    %c0_11 = arith.constant 0 : index
    %15 = vector.load %arg2[%c344, %c0_11] : memref<352x10xf32, #tpu.memory_space<vmem>>, vector<1x10xf32>
    %c345 = arith.constant 345 : index
    %c0_12 = arith.constant 0 : index
    %16 = vector.load %arg2[%c345, %c0_12] : memref<352x10xf32, #tpu.memory_space<vmem>>, vector<1x10xf32>
    %c346 = arith.constant 346 : index
    %c0_13 = arith.constant 0 : index
    %17 = vector.load %arg2[%c346, %c0_13] : memref<352x10xf32, #tpu.memory_space<vmem>>, vector<1x10xf32>
    %c347 = arith.constant 347 : index
    %c0_14 = arith.constant 0 : index
    %18 = vector.load %arg2[%c347, %c0_14] : memref<352x10xf32, #tpu.memory_space<vmem>>, vector<1x1xf32>
    %cst_15 = arith.constant dense<0.000000e+00> : vector<8x24xf32>
    %19 = tpu.matmul %2, %1, %cst_15 {dimension_numbers = #tpu.dot_dimension_numbers<[1], [0], [0], [1], [0, 0, 1, 1], [], []>} : vector<8x8xf32>, vector<8x24xf32>, vector<8x24xf32> -> vector<8x24xf32>
    %cst_16 = arith.constant dense<0.000000e+00> : vector<8x10xf32>
    %20 = tpu.matmul %19, %8, %cst_16 {dimension_numbers = #tpu.dot_dimension_numbers<[1], [0], [0], [1], [0, 0, 1, 1], [], []>} : vector<8x24xf32>, vector<24x10xf32>, vector<8x10xf32> -> vector<8x10xf32>
    %21 = vector.broadcast %15 : vector<1x10xf32> to vector<8x10xf32>
    %22 = arith.addf %20, %21 : vector<8x10xf32>
    %23 = tpu.concatenate %22, %22, %22, %22, %22 in 0 : vector<8x10xf32>, vector<8x10xf32>, vector<8x10xf32>, vector<8x10xf32>, vector<8x10xf32> -> vector<40x10xf32>
    %24 = tpu.transpose %22, [1, 0] : vector<8x10xf32> -> vector<10x8xf32>
    %cst_17 = arith.constant dense<0.000000e+00> : vector<40x8xf32>
    %25 = tpu.matmul %10, %24, %cst_17 {dimension_numbers = #tpu.dot_dimension_numbers<[1], [0], [0], [1], [0, 0, 1, 1], [], []>} : vector<40x10xf32>, vector<10x8xf32>, vector<40x8xf32> -> vector<40x8xf32>
    %26 = arith.mulf %23, %9 : vector<40x10xf32>
    %cst_18 = arith.constant dense<0.000000e+00> : vector<40xf32>
    %27 = vector.multi_reduction <add>, %26, %cst_18 [1] : vector<40x10xf32> to vector<40xf32>
    %28 = vector.shape_cast %27 : vector<40xf32> to vector<40x1xf32>
    %29 = arith.addf %28, %13 : vector<40x1xf32>
    %30 = vector.broadcast %29 : vector<40x1xf32> to vector<40x8xf32>
    %31 = arith.addf %25, %30 : vector<40x8xf32>
    %cst_19 = arith.constant 0.000000e+00 : f32
    %32 = vector.broadcast %cst_19 : f32 to vector<40x8xf32>
    %33 = arith.cmpf oge, %31, %32 : vector<40x8xf32>
    %cst_20 = arith.constant 0.00999999977 : f32
    %34 = vector.broadcast %cst_20 : f32 to vector<40x8xf32>
    %35 = arith.mulf %34, %31 : vector<40x8xf32>
    %36 = arith.select %33, %31, %35 : vector<40x8xi1>, vector<40x8xf32>
    %37 = arith.addf %36, %7 : vector<40x8xf32>
    %cst_21 = arith.constant dense<0xFF800000> : vector<40xf32>
    %38 = vector.multi_reduction <maximumf>, %37, %cst_21 [1] : vector<40x8xf32> to vector<40xf32>
    %39 = vector.shape_cast %38 : vector<40xf32> to vector<40x1xf32>
    %40 = vector.broadcast %39 : vector<40x1xf32> to vector<40x8xf32>
    %41 = arith.subf %37, %40 : vector<40x8xf32>
    %42 = math.exp %41 : vector<40x8xf32>
    %43 = arith.mulf %42, %3 : vector<40x8xf32>
    %cst_22 = arith.constant dense<0.000000e+00> : vector<40xf32>
    %44 = vector.multi_reduction <add>, %43, %cst_22 [1] : vector<40x8xf32> to vector<40xf32>
    %45 = vector.shape_cast %44 : vector<40xf32> to vector<40x1xf32>
    %cst_23 = arith.constant 0.000000e+00 : f32
    %46 = vector.broadcast %cst_23 : f32 to vector<40x1xf32>
    %47 = arith.cmpf oeq, %45, %46 : vector<40x1xf32>
    %cst_24 = arith.constant 1.000000e+00 : f32
    %48 = vector.broadcast %cst_24 : f32 to vector<40x1xf32>
    %49 = arith.select %47, %48, %45 : vector<40x1xi1>, vector<40x1xf32>
    %50 = tpu.reciprocal %49 {approx = true} : vector<40x1xf32> -> vector<40x1xf32>
    %51 = vector.broadcast %50 : vector<40x1xf32> to vector<40x8xf32>
    %52 = arith.mulf %43, %51 : vector<40x8xf32>
    %cst_25 = arith.constant dense<0.000000e+00> : vector<40x10xf32>
    %53 = tpu.matmul %52, %22, %cst_25 {dimension_numbers = #tpu.dot_dimension_numbers<[1], [0], [0], [1], [0, 0, 1, 1], [], []>} : vector<40x8xf32>, vector<8x10xf32>, vector<40x10xf32> -> vector<40x10xf32>
    %54 = arith.addf %23, %53 : vector<40x10xf32>
    %cst_26 = arith.constant 0.000000e+00 : f32
    %55 = vector.broadcast %cst_26 : f32 to vector<40x10xf32>
    %56 = arith.cmpf ogt, %54, %55 : vector<40x10xf32>
    %cst_27 = arith.constant 0.000000e+00 : f32
    %57 = vector.broadcast %cst_27 : f32 to vector<40x10xf32>
    %58 = arith.minimumf %54, %57 : vector<40x10xf32>
    %59 = math.exp %58 : vector<40x10xf32>
    %cst_28 = arith.constant 1.000000e+00 : f32
    %60 = vector.broadcast %cst_28 : f32 to vector<40x10xf32>
    %61 = arith.subf %59, %60 : vector<40x10xf32>
    %62 = arith.select %56, %54, %61 : vector<40x10xi1>, vector<40x10xf32>
    %c264 = arith.constant 264 : index
    %c0_29 = arith.constant 0 : index
    %63 = vector.load %arg2[%c264, %c0_29] : memref<352x10xf32, #tpu.memory_space<vmem>>, vector<10x10xf32>
    %64 = vector.extract_strided_slice %62 {offsets = [0, 0], sizes = [8, 10], strides = [1, 1]} : vector<40x10xf32> to vector<8x10xf32>
    %cst_30 = arith.constant dense<0.000000e+00> : vector<8x10xf32>
    %65 = tpu.matmul %64, %63, %cst_30 {dimension_numbers = #tpu.dot_dimension_numbers<[1], [0], [0], [1], [0, 0, 1, 1], [], []>} : vector<8x10xf32>, vector<10x10xf32>, vector<8x10xf32> -> vector<8x10xf32>
    %66 = vector.broadcast %16 : vector<1x10xf32> to vector<8x10xf32>
    %67 = arith.addf %66, %65 : vector<8x10xf32>
    %c280 = arith.constant 280 : index
    %c0_31 = arith.constant 0 : index
    %68 = vector.load %arg2[%c280, %c0_31] : memref<352x10xf32, #tpu.memory_space<vmem>>, vector<10x10xf32>
    %69 = vector.extract_strided_slice %62 {offsets = [8, 0], sizes = [8, 10], strides = [1, 1]} : vector<40x10xf32> to vector<8x10xf32>
    %cst_32 = arith.constant dense<0.000000e+00> : vector<8x10xf32>
    %70 = tpu.matmul %69, %68, %cst_32 {dimension_numbers = #tpu.dot_dimension_numbers<[1], [0], [0], [1], [0, 0, 1, 1], [], []>} : vector<8x10xf32>, vector<10x10xf32>, vector<8x10xf32> -> vector<8x10xf32>
    %71 = arith.addf %67, %70 : vector<8x10xf32>
    %c296 = arith.constant 296 : index
    %c0_33 = arith.constant 0 : index
    %72 = vector.load %arg2[%c296, %c0_33] : memref<352x10xf32, #tpu.memory_space<vmem>>, vector<10x10xf32>
    %73 = vector.extract_strided_slice %62 {offsets = [16, 0], sizes = [8, 10], strides = [1, 1]} : vector<40x10xf32> to vector<8x10xf32>
    %cst_34 = arith.constant dense<0.000000e+00> : vector<8x10xf32>
    %74 = tpu.matmul %73, %72, %cst_34 {dimension_numbers = #tpu.dot_dimension_numbers<[1], [0], [0], [1], [0, 0, 1, 1], [], []>} : vector<8x10xf32>, vector<10x10xf32>, vector<8x10xf32> -> vector<8x10xf32>
    %75 = arith.addf %71, %74 : vector<8x10xf32>
    %c312 = arith.constant 312 : index
    %c0_35 = arith.constant 0 : index
    %76 = vector.load %arg2[%c312, %c0_35] : memref<352x10xf32, #tpu.memory_space<vmem>>, vector<10x10xf32>
    %77 = vector.extract_strided_slice %62 {offsets = [24, 0], sizes = [8, 10], strides = [1, 1]} : vector<40x10xf32> to vector<8x10xf32>
    %cst_36 = arith.constant dense<0.000000e+00> : vector<8x10xf32>
    %78 = tpu.matmul %77, %76, %cst_36 {dimension_numbers = #tpu.dot_dimension_numbers<[1], [0], [0], [1], [0, 0, 1, 1], [], []>} : vector<8x10xf32>, vector<10x10xf32>, vector<8x10xf32> -> vector<8x10xf32>
    %79 = arith.addf %75, %78 : vector<8x10xf32>
    %c328 = arith.constant 328 : index
    %c0_37 = arith.constant 0 : index
    %80 = vector.load %arg2[%c328, %c0_37] : memref<352x10xf32, #tpu.memory_space<vmem>>, vector<10x10xf32>
    %81 = vector.extract_strided_slice %62 {offsets = [32, 0], sizes = [8, 10], strides = [1, 1]} : vector<40x10xf32> to vector<8x10xf32>
    %cst_38 = arith.constant dense<0.000000e+00> : vector<8x10xf32>
    %82 = tpu.matmul %81, %80, %cst_38 {dimension_numbers = #tpu.dot_dimension_numbers<[1], [0], [0], [1], [0, 0, 1, 1], [], []>} : vector<8x10xf32>, vector<10x10xf32>, vector<8x10xf32> -> vector<8x10xf32>
    %83 = arith.addf %79, %82 : vector<8x10xf32>
    %84 = tpu.concatenate %83, %83, %83, %83, %83 in 0 : vector<8x10xf32>, vector<8x10xf32>, vector<8x10xf32>, vector<8x10xf32>, vector<8x10xf32> -> vector<40x10xf32>
    %85 = tpu.transpose %83, [1, 0] : vector<8x10xf32> -> vector<10x8xf32>
    %cst_39 = arith.constant dense<0.000000e+00> : vector<40x8xf32>
    %86 = tpu.matmul %12, %85, %cst_39 {dimension_numbers = #tpu.dot_dimension_numbers<[1], [0], [0], [1], [0, 0, 1, 1], [], []>} : vector<40x10xf32>, vector<10x8xf32>, vector<40x8xf32> -> vector<40x8xf32>
    %87 = arith.mulf %84, %11 : vector<40x10xf32>
    %cst_40 = arith.constant dense<0.000000e+00> : vector<40xf32>
    %88 = vector.multi_reduction <add>, %87, %cst_40 [1] : vector<40x10xf32> to vector<40xf32>
    %89 = vector.shape_cast %88 : vector<40xf32> to vector<40x1xf32>
    %90 = arith.addf %89, %14 : vector<40x1xf32>
    %91 = vector.broadcast %90 : vector<40x1xf32> to vector<40x8xf32>
    %92 = arith.addf %86, %91 : vector<40x8xf32>
    %cst_41 = arith.constant 0.000000e+00 : f32
    %93 = vector.broadcast %cst_41 : f32 to vector<40x8xf32>
    %94 = arith.cmpf oge, %92, %93 : vector<40x8xf32>
    %cst_42 = arith.constant 0.00999999977 : f32
    %95 = vector.broadcast %cst_42 : f32 to vector<40x8xf32>
    %96 = arith.mulf %95, %92 : vector<40x8xf32>
    %97 = arith.select %94, %92, %96 : vector<40x8xi1>, vector<40x8xf32>
    %98 = arith.addf %97, %7 : vector<40x8xf32>
    %cst_43 = arith.constant dense<0xFF800000> : vector<40xf32>
    %99 = vector.multi_reduction <maximumf>, %98, %cst_43 [1] : vector<40x8xf32> to vector<40xf32>
    %100 = vector.shape_cast %99 : vector<40xf32> to vector<40x1xf32>
    %101 = vector.broadcast %100 : vector<40x1xf32> to vector<40x8xf32>
    %102 = arith.subf %98, %101 : vector<40x8xf32>
    %103 = math.exp %102 : vector<40x8xf32>
    %104 = arith.mulf %103, %3 : vector<40x8xf32>
    %cst_44 = arith.constant dense<0.000000e+00> : vector<40xf32>
    %105 = vector.multi_reduction <add>, %104, %cst_44 [1] : vector<40x8xf32> to vector<40xf32>
    %106 = vector.shape_cast %105 : vector<40xf32> to vector<40x1xf32>
    %cst_45 = arith.constant 0.000000e+00 : f32
    %107 = vector.broadcast %cst_45 : f32 to vector<40x1xf32>
    %108 = arith.cmpf oeq, %106, %107 : vector<40x1xf32>
    %cst_46 = arith.constant 1.000000e+00 : f32
    %109 = vector.broadcast %cst_46 : f32 to vector<40x1xf32>
    %110 = arith.select %108, %109, %106 : vector<40x1xi1>, vector<40x1xf32>
    %111 = tpu.reciprocal %110 {approx = true} : vector<40x1xf32> -> vector<40x1xf32>
    %112 = vector.broadcast %111 : vector<40x1xf32> to vector<40x8xf32>
    %113 = arith.mulf %104, %112 : vector<40x8xf32>
    %114 = vector.shape_cast %113 : vector<40x8xf32> to vector<5x8x8xf32>
    %cst_47 = arith.constant dense<0.000000e+00> : vector<8x8xf32>
    %115 = vector.multi_reduction <add>, %114, %cst_47 [0] : vector<5x8x8xf32> to vector<8x8xf32>
    %cst_48 = arith.constant 5.000000e+00 : f32
    %116 = vector.broadcast %cst_48 : f32 to vector<8x8xf32>
    %117 = arith.divf %115, %116 : vector<8x8xf32>
    %cst_49 = arith.constant dense<0.000000e+00> : vector<8x10xf32>
    %118 = tpu.matmul %117, %83, %cst_49 {dimension_numbers = #tpu.dot_dimension_numbers<[1], [0], [0], [1], [0, 0, 1, 1], [], []>} : vector<8x8xf32>, vector<8x10xf32>, vector<8x10xf32> -> vector<8x10xf32>
    %119 = arith.addf %83, %118 : vector<8x10xf32>
    %cst_50 = arith.constant 0.000000e+00 : f32
    %120 = vector.broadcast %cst_50 : f32 to vector<8x10xf32>
    %121 = arith.cmpf ogt, %119, %120 : vector<8x10xf32>
    %cst_51 = arith.constant 0.000000e+00 : f32
    %122 = vector.broadcast %cst_51 : f32 to vector<8x10xf32>
    %123 = arith.minimumf %119, %122 : vector<8x10xf32>
    %124 = math.exp %123 : vector<8x10xf32>
    %cst_52 = arith.constant 1.000000e+00 : f32
    %125 = vector.broadcast %cst_52 : f32 to vector<8x10xf32>
    %126 = arith.subf %124, %125 : vector<8x10xf32>
    %127 = arith.select %121, %119, %126 : vector<8x10xi1>, vector<8x10xf32>
    %cst_53 = arith.constant dense<0.000000e+00> : vector<10xf32>
    %128 = vector.multi_reduction <add>, %127, %cst_53 [0] : vector<8x10xf32> to vector<10xf32>
    %129 = vector.shape_cast %128 : vector<10xf32> to vector<1x10xf32>
    %cst_54 = arith.constant 1.250000e-01 : f32
    %130 = vector.broadcast %cst_54 : f32 to vector<1x10xf32>
    %131 = arith.mulf %129, %130 : vector<1x10xf32>
    %132 = arith.mulf %131, %17 : vector<1x10xf32>
    %cst_55 = arith.constant dense<0.000000e+00> : vector<1xf32>
    %133 = vector.multi_reduction <add>, %132, %cst_55 [1] : vector<1x10xf32> to vector<1xf32>
    %134 = vector.shape_cast %133 : vector<1xf32> to vector<1x1xf32>
    %135 = arith.addf %134, %18 : vector<1x1xf32>
    %136 = vector.shape_cast %135 : vector<1x1xf32> to vector<1x1xf32>
    %137 = vector.broadcast %136 : vector<1x1xf32> to vector<1x128xf32>
    %c0_56 = arith.constant 0 : index
    %c0_57 = arith.constant 0 : index
    %c0_58 = arith.constant 0 : index
    %138 = vector.load %arg3[%c0_56, %c0_57, %c0_58] : memref<1x1x128xf32, #tpu.memory_space<vmem>>, vector<1x1x128xf32>
    %139 = vector.shape_cast %138 : vector<1x1x128xf32> to vector<1x128xf32>
    %140 = vector.shape_cast %137 : vector<1x128xf32> to vector<1x1x128xf32>
    tpu.vector_store %arg3[%c0_56, %c0_57, %c0_58], %140 {strides = array<i32>} : memref<1x1x128xf32, #tpu.memory_space<vmem>>, vector<1x1x128xf32>,
    return
  }
  func.func @transform_0(%arg0: i32) -> (i32, i32, i32) {
    %c0_i32 = arith.constant 0 : i32
    %c0_i32_0 = arith.constant 0 : i32
    %c0_i32_1 = arith.constant 0 : i32
    return %arg0, %c0_i32, %c0_i32_0 : i32, i32, i32
  }
  func.func @transform_1(%arg0: i32) -> (i32, i32) {
    %c0_i32 = arith.constant 0 : i32
    %c0_i32_0 = arith.constant 0 : i32
    %c0_i32_1 = arith.constant 0 : i32
    return %c0_i32, %c0_i32_0 : i32, i32
  }
  func.func @transform_2(%arg0: i32) -> (i32, i32, i32) {
    %c0_i32 = arith.constant 0 : i32
    %c0_i32_0 = arith.constant 0 : i32
    %c0_i32_1 = arith.constant 0 : i32
    return %arg0, %c0_i32, %c0_i32_0 : i32, i32, i32
  }
}

</mosaic_0001>

<llo_original>
// kernel: gat_forward.1
$region0: #{gat_forward.1}
  #allocation0 [shape = 'u32[]', space=smem, size = 0x4, offset = 0x4, fixed_abs, tag = 'smem constant byte address 0x4 - core index']
  #allocation1 [shape = 'u32[144,128]{1,0:T(1,128)}', space=vmem, size = 0x12000, scoped, tag = 'internal scratch']
  %s0 = inlined_call_operand.vmem [shape: f32[8,8,24], index: 0, kind: input, shape index: {}]
  %s1 = inlined_call_operand.vmem [shape: f32[352,10], index: 1, kind: input, shape index: {}]
  %s2 = inlined_call_operand.vmem [shape: f32[8,1,128], index: 2, kind: output, shape index: {}]
  %s3 = sld [smem:[#allocation0]]
  $region41: #{gat_forward.1} parent=0
    _
  %s5 = ssub.s32 1, %s3
  %s6 = scalar_select 0, %s5, %s3
  loop: start=0, step=1, limit=10
  $region2: #{gat_forward.1} parent=0 // loop_pre_header
    _
  $region3: #{gat_forward.1} parent=0 // loop_header
    %s8 = sphi 0, %s12
    %p9 = scmp.ge.s32.totalorder %s8, 10
    %s18 = sphi 0, %s20
    %s21 = sphi 0, %s18
    %s22 = sphi 0, %s21
    %s38 = sphi 0, %s22
    %s42 = sphi 0, %s42
    %s44 = sphi 0, %s42
    %s45 = sphi 0, %s44
    %s59 = sphi 0, %s45
    %s65 = sphi 0, %s67
    %s68 = sphi 0, %s65
    %s69 = sphi 0, %s68
    %s85 = sphi 0, %s69
  $region4: #{gat_forward.1} parent=0 // loop_header_branch
    %11 = sbr.rel (%p9) target = $region8
  $region5: #{gat_forward.1} parent=0 // loop_body
    %s13 = ssub.s32 %s8, 1
    %s14 = ssub.s32 %s8, 2
    %s15 = sadd.s32 %s8, 1
    %s16 = ssub.s32 %s8, %s15
    %p17 = scmp.eq.s32.totalorder %s16, 0
    %s19 = sadd.s32 %s18, 1
    %s20 = scalar_select %p17, %s18, %s19
    %p23 = pneg %p17
    %p24 = scmp.eq.s32.totalorder %s8, 7
    %p25 = por %p23, %p24
    %p26 = scmp.ne.s32.totalorder %s18, %s21
    %p27 = scmp.eq.s32.totalorder %s8, 0
    %p28 = por %p26, %p27
    %p29 = scmp.ne.s32.totalorder %s18, %s21
    %p30 = scmp.eq.s32.totalorder %s13, 7
    %p31 = por %p29, %p30
    %p32 = scmp.ne.s32.totalorder %s21, %s22
    %p33 = scmp.eq.s32.totalorder %s13, 0
    %p34 = por %p32, %p33
    %p35 = scmp.ne.s32.totalorder %s21, %s22
    %p36 = scmp.eq.s32.totalorder %s14, 7
    %p37 = por %p35, %p36
    %p39 = scmp.ne.s32.totalorder %s22, %s38
    %p40 = scmp.eq.s32.totalorder %s14, 0
    %p41 = por %p39, %p40
    %s43 = sadd.s32 %s42, 1
    %p46 = scmp.eq.s32.totalorder %s8, 7
    %p47 = scmp.ne.s32.totalorder %s42, %s44
    %p48 = scmp.eq.s32.totalorder %s8, 0
    %p49 = por %p47, %p48
    %p50 = scmp.ne.s32.totalorder %s42, %s44
    %p51 = scmp.eq.s32.totalorder %s13, 7
    %p52 = por %p50, %p51
    %p53 = scmp.ne.s32.totalorder %s44, %s45
    %p54 = scmp.eq.s32.totalorder %s13, 0
    %p55 = por %p53, %p54
    %p56 = scmp.ne.s32.totalorder %s44, %s45
    %p57 = scmp.eq.s32.totalorder %s14, 7
    %p58 = por %p56, %p57
    %p60 = scmp.ne.s32.totalorder %s45, %s59
    %p61 = scmp.eq.s32.totalorder %s14, 0
    %p62 = por %p60, %p61
    %s63 = ssub.s32 %s8, %s15
    %p64 = scmp.eq.s32.totalorder %s63, 0
    %s66 = sadd.s32 %s65, 1
    %s67 = scalar_select %p64, %s65, %s66
    %p70 = pneg %p64
    %p71 = scmp.eq.s32.totalorder %s8, 7
    %p72 = por %p70, %p71
    %p73 = scmp.ne.s32.totalorder %s65, %s68
    %p74 = scmp.eq.s32.totalorder %s8, 0
    %p75 = por %p73, %p74
    %p76 = scmp.ne.s32.totalorder %s65, %s68
    %p77 = scmp.eq.s32.totalorder %s13, 7
    %p78 = por %p76, %p77
    %p79 = scmp.ne.s32.totalorder %s68, %s69
    %p80 = scmp.eq.s32.totalorder %s13, 0
    %p81 = por %p79, %p80
    %p82 = scmp.ne.s32.totalorder %s68, %s69
    %p83 = scmp.eq.s32.totalorder %s14, 7
    %p84 = por %p82, %p83
    %p86 = scmp.ne.s32.totalorder %s69, %s85
    %p87 = scmp.eq.s32.totalorder %s14, 0
    %p88 = por %p86, %p87
    %p89 = scmp.le.s32.totalorder 1, %s8
    %p90 = scmp.lt.s32.totalorder %s8, 9
    %p91 = pnand %p89, %p90
    %p92 = pneg %p91
    // Predicated region
    $region9: #{gat_forward.1} parent=5 // pred_check
      _
    $region10: #{gat_forward.1} parent=5 // pred_check_branch
      %94 = sbr.rel (%p91) target = $region12
    $region11: #{gat_forward.1} parent=5 // pred_region
      %s95 = ssub.s32 %s8, 1
      // Predicated region
      $region13: #{gat_forward.1} parent=11 // pred_check
        %p96 = pneg %p55
      $region14: #{gat_forward.1} parent=11 // pred_check_branch
        %98 = sbr.rel (%p96) target = $region16
      $region15: #{gat_forward.1} parent=11 // pred_region
        _
      $region16: #{gat_forward.1} parent=11 // pred_fallthru
        _
    $region12: #{gat_forward.1} parent=5 // pred_fallthru
      _
    %p99 = scmp.lt.s32.totalorder %s8, 8
    // Predicated region
    $region17: #{gat_forward.1} parent=5 // pred_check
      %p100 = pneg %p99
    $region18: #{gat_forward.1} parent=5 // pred_check_branch
      %102 = sbr.rel (%p100) target = $region20
    $region19: #{gat_forward.1} parent=5 // pred_region
      // Predicated region
      $region21: #{gat_forward.1} parent=19 // pred_check
        %p103 = pneg %p28
      $region22: #{gat_forward.1} parent=19 // pred_check_branch
        %105 = sbr.rel (%p103) target = $region24
      $region23: #{gat_forward.1} parent=19 // pred_region
        %p106 = scmp.lt.s32.totalorder %s8, 7
        %s107 = scalar_select %p106, %s8, 7
        %s108 = smul.addr %s107, 8
        %s109 = scalar_lea.vmem %s0, %s108
      $region24: #{gat_forward.1} parent=19 // pred_fallthru
        _
    $region20: #{gat_forward.1} parent=5 // pred_fallthru
      _
    %p110 = scmp.le.s32.totalorder 1, %s8
    %p111 = scmp.lt.s32.totalorder %s8, 9
    %p112 = pnand %p110, %p111
    %p113 = pneg %p112
    // Predicated region
    $region25: #{gat_forward.1} parent=5 // pred_check
      _
    $region26: #{gat_forward.1} parent=5 // pred_check_branch
      %115 = sbr.rel (%p112) target = $region28
    $region27: #{gat_forward.1} parent=5 // pred_region
      %s116 = ssub.s32 %s8, 1
      %p117 = scmp.lt.s32.totalorder %s13, 7
      %s118 = scalar_select %p117, %s13, 7
      %s119 = smul.addr %s118, 8
      %s120 = scalar_lea.vmem %s0, %s119
      %p121 = pneg %p34
      %p122 = pneg %p31
      %p123 = pneg %p55
      %p124 = pneg %p52
      %p125 = pneg %p81
      %p126 = pneg %p78
      %p127 = scmp.lt.s32.totalorder %s13, 7
      %s128 = scalar_select %p127, %s13, 7
      %s129 = scalar_lea.vmem %s2, %s128
      %p130 = scmp.lt.s32.totalorder %s13, 7
      %s131 = scalar_select %p130, %s13, 7
      %s132 = smul.addr %s131, 8
      %s133 = scalar_lea.vmem %s0, %s132
      %p134 = scmp.lt.s32.totalorder %s13, 7
      %s135 = scalar_select %p134, %s13, 7
      %s136 = scalar_lea.vmem %s2, %s135
      %v137 = vld [vmem:[%s133] sm:$0xff]
      %v138 = vsub.f32 %v137, 1.0
      %v139 = vmul.f32 %v138, 1e+30
      %v140 = vld [vmem:[%s1] sm:$0xff]
      %v141 = vld [vmem:[%s1 + $0x8] sm:$0xff]
      %v142 = vld [vmem:[%s1 + $0x10] sm:$0xff]
      %v143 = vld [vmem:[%s1 + $0x18] sm:$0xff]
      %v144 = vld [vmem:[%s1 + $0x20] sm:$0xff]
      %v145 = vld [vmem:[%s1 + $0x28] sm:$0xff]
      %v146 = vld [vmem:[%s1 + $0x30] sm:$0xff]
      %v147 = vld [vmem:[%s1 + $0x38] sm:$0xff]
      %v148 = vld [vmem:[%s1 + $0x40] sm:$0xff]
      %v149 = vld [vmem:[%s1 + $0x48] sm:$0xff]
      %v150 = vld [vmem:[%s1 + $0x50] sm:$0xff]
      %v151 = vld [vmem:[%s1 + $0x58] sm:$0xff]
      %v152 = vld [vmem:[%s1 + $0x60] sm:$0xff]
      %v153 = vld [vmem:[%s1 + $0x68] sm:$0xff]
      %v154 = vld [vmem:[%s1 + $0x70] sm:$0xff]
      %v155 = vld [vmem:[%s1 + $0x78] sm:$0xff]
      %v156 = vld [vmem:[%s1 + $0x80] sm:$0xff]
      %v157 = vld [vmem:[%s1 + $0x88] sm:$0xff]
      %v158 = vld [vmem:[%s1 + $0x90] sm:$0xff]
      %v159 = vld [vmem:[%s1 + $0x98] sm:$0xff]
      %v160 = vld [vmem:[%s1 + $0xa0] sm:$0xff]
      %v161 = vld [vmem:[%s1 + $0xa8] sm:$0xff]
      %v162 = vld [vmem:[%s1 + $0xb0] sm:$0xff]
      %v163 = vld [vmem:[%s1 + $0xb8] sm:$0xff]
      %v164 = vld [vmem:[%s1 + $0xc0] sm:$0xff]
      %v165 = vld [vmem:[%s1 + $0xc8] sm:$0xff]
      %v166 = vld [vmem:[%s1 + $0xd0] sm:$0xff]
      %v167 = vld [vmem:[%s1 + $0xd8] sm:$0xff]
      %v168 = vld [vmem:[%s1 + $0xe0] sm:$0xff]
      %v169 = vld [vmem:[%s1 + $0xe8] sm:$0xff]
      %v170 = vld [vmem:[%s1 + $0xf0] sm:$0xff]
      %v171 = vld [vmem:[%s1 + $0xf8] sm:$0xff]
      %v172 = vld [vmem:[%s1 + $0x100] sm:$0xff]
      %v173 = vld [vmem:[%s1 + $0x158] sm:$0x1]
      %v174 = vld [vmem:[%s1 + $0x159] sm:$0x1]
      %v175 = vld [vmem:[%s1 + $0x15a] sm:$0x1]
      %v176 = vld [vmem:[%s1 + $0x15b] sm:$0x1]
      %vm177 = vcmask 64512
      %v179 = vsel %vm177, %v137, 0
      %181 = vmatprep.subr.mxu0 0.0
      %182 = vmatpush1.msra.mxu0 0.0
      %183 = vmatprep.subr.mxu0 0.0
      %184 = vmatpush1.msra.mxu0 0.0
      %185 = vmatprep.subr.mxu0 0.0
      %186 = vmatpush1.msra.mxu0 0.0
      %187 = vmatprep.subr.mxu0 0.0
      %188 = vmatpush1.msra.mxu0 0.0
      %189 = vmatprep.subr.mxu0 0.0
      %190 = vmatpush1.msra.mxu0 0.0
      %191 = vmatprep.subr.mxu0 0.0
      %192 = vmatpush1.msra.mxu0 0.0
      %193 = vmatprep.subr.mxu0 0.0
      %194 = vmatpush1.msra.mxu0 0.0
      %195 = vmatprep.subr.mxu0 0.0
      %196 = vmatpush1.msra.mxu0 0.0
      %197 = vmatprep.subr.mxu0 0.0
      %198 = vmatpush1.msra.mxu0 0.0
      %199 = vmatprep.subr.mxu0 0.0
      %200 = vmatpush1.msra.mxu0 0.0
      %201 = vmatprep.subr.mxu0 0.0
      %202 = vmatpush1.msra.mxu0 0.0
      %203 = vmatprep.subr.mxu0 0.0
      %204 = vmatpush1.msra.mxu0 0.0
      %205 = vmatprep.subr.mxu0 0.0
      %206 = vmatpush1.msra.mxu0 0.0
      %207 = vmatprep.subr.mxu0 0.0
      %208 = vmatpush1.msra.mxu0 0.0
      %209 = vmatprep.subr.mxu0 0.0
      %210 = vmatpush1.msra.mxu0 0.0
      %211 = vmatprep.subr.mxu0 0.0
      %212 = vmatpush1.msra.mxu0 %v137
      %213 = vmatprep.subr.mxu0 0.0
      %214 = vmatpush2.msra.mxu0 0.0
      %215 = vmatprep.subr.mxu0 0.0
      %216 = vmatpush2.msra.mxu0 0.0
      %217 = vmatprep.subr.mxu0 0.0
      %218 = vmatpush2.msra.mxu0 0.0
      %219 = vmatprep.subr.mxu0 0.0
      %220 = vmatpush2.msra.mxu0 0.0
      %221 = vmatprep.subr.mxu0 0.0
      %222 = vmatpush2.msra.mxu0 0.0
      %223 = vmatprep.subr.mxu0 0.0
      %224 = vmatpush2.msra.mxu0 0.0
      %225 = vmatprep.subr.mxu0 0.0
      %226 = vmatpush2.msra.mxu0 0.0
      %227 = vmatprep.subr.mxu0 0.0
      %228 = vmatpush2.msra.mxu0 0.0
      %229 = vmatprep.subr.mxu0 0.0
      %230 = vmatpush2.msra.mxu0 0.0
      %231 = vmatprep.subr.mxu0 0.0
      %232 = vmatpush2.msra.mxu0 0.0
      %233 = vmatprep.subr.mxu0 0.0
      %234 = vmatpush2.msra.mxu0 0.0
      %235 = vmatprep.subr.mxu0 0.0
      %236 = vmatpush2.msra.mxu0 0.0
      %237 = vmatprep.subr.mxu0 0.0
      %238 = vmatpush2.msra.mxu0 0.0
      %239 = vmatprep.subr.mxu0 0.0
      %240 = vmatpush2.msra.mxu0 0.0
      %241 = vmatprep.subr.mxu0 0.0
      %242 = vmatpush2.msra.mxu0 0.0
      %243 = vmatprep.subr.mxu0 0.0
      %244 = vmatpush2.msra.mxu0 0.0
      %245 = vmatprep.mubr.f32.mxu0 0.0
      %246 = vmatmul.mubr.f32.gmra.mxu0 %v179
      %v247 = vpop.f32.mrf.mxu0
      %v248 = vadd.f32 0.0, %v247
      %v249 = vpop.f32.mrf.mxu0
      %250 = vdwg.mxu0
      %v251 = vlaneseq
      %v252 = vshrl.u32 %v251, 7
      %v253 = vsub.s32 0, %v252
      %v254 = vrot.slane %v173, %v253
      %vm255 = vcmask 195584
      %v257 = vsel %vm255, %v248, 0
      %259 = vmatprep.subr.mxu0 0.0
      %260 = vmatpush1.msra.mxu0 0.0
      %261 = vmatprep.subr.mxu0 0.0
      %262 = vmatpush1.msra.mxu0 0.0
      %263 = vmatprep.subr.mxu0 0.0
      %264 = vmatpush1.msra.mxu0 0.0
      %265 = vmatprep.subr.mxu0 0.0
      %266 = vmatpush1.msra.mxu0 0.0
      %267 = vmatprep.subr.mxu0 0.0
      %268 = vmatpush1.msra.mxu0 0.0
      %269 = vmatprep.subr.mxu0 0.0
      %270 = vmatpush1.msra.mxu0 0.0
      %271 = vmatprep.subr.mxu0 0.0
      %272 = vmatpush1.msra.mxu0 0.0
      %273 = vmatprep.subr.mxu0 0.0
      %274 = vmatpush1.msra.mxu0 0.0
      %275 = vmatprep.subr.mxu0 0.0
      %276 = vmatpush1.msra.mxu0 0.0
      %277 = vmatprep.subr.mxu0 0.0
      %278 = vmatpush1.msra.mxu0 0.0
      %279 = vmatprep.subr.mxu0 0.0
      %280 = vmatpush1.msra.mxu0 0.0
      %281 = vmatprep.subr.mxu0 0.0
      %282 = vmatpush1.msra.mxu0 0.0
      %283 = vmatprep.subr.mxu0 0.0
      %284 = vmatpush1.msra.mxu0 0.0
      %285 = vmatprep.subr.mxu0 0.0
      %286 = vmatpush1.msra.mxu0 %v142
      %287 = vmatprep.subr.mxu0 0.0
      %288 = vmatpush1.msra.mxu0 %v141
      %289 = vmatprep.subr.mxu0 0.0
      %290 = vmatpush1.msra.mxu0 %v140
      %291 = vmatprep.subr.mxu0 0.0
      %292 = vmatpush2.msra.mxu0 0.0
      %293 = vmatprep.subr.mxu0 0.0
      %294 = vmatpush2.msra.mxu0 0.0
      %295 = vmatprep.subr.mxu0 0.0
      %296 = vmatpush2.msra.mxu0 0.0
      %297 = vmatprep.subr.mxu0 0.0
      %298 = vmatpush2.msra.mxu0 0.0
      %299 = vmatprep.subr.mxu0 0.0
      %300 = vmatpush2.msra.mxu0 0.0
      %301 = vmatprep.subr.mxu0 0.0
      %302 = vmatpush2.msra.mxu0 0.0
      %303 = vmatprep.subr.mxu0 0.0
      %304 = vmatpush2.msra.mxu0 0.0
      %305 = vmatprep.subr.mxu0 0.0
      %306 = vmatpush2.msra.mxu0 0.0
      %307 = vmatprep.subr.mxu0 0.0
      %308 = vmatpush2.msra.mxu0 0.0
      %309 = vmatprep.subr.mxu0 0.0
      %310 = vmatpush2.msra.mxu0 0.0
      %311 = vmatprep.subr.mxu0 0.0
      %312 = vmatpush2.msra.mxu0 0.0
      %313 = vmatprep.subr.mxu0 0.0
      %314 = vmatpush2.msra.mxu0 0.0
      %315 = vmatprep.subr.mxu0 0.0
      %316 = vmatpush2.msra.mxu0 0.0
      %317 = vmatprep.subr.mxu0 0.0
      %318 = vmatpush2.msra.mxu0 0.0
      %319 = vmatprep.subr.mxu0 0.0
      %320 = vmatpush2.msra.mxu0 0.0
      %321 = vmatprep.subr.mxu0 0.0
      %322 = vmatpush2.msra.mxu0 0.0
      %323 = vmatprep.mubr.f32.mxu0 0.0
      %324 = vmatmul.mubr.f32.gmra.mxu0 %v257
      %v325 = vpop.f32.mrf.mxu0
      %v326 = vadd.f32 %v254, %v325
      %v327 = vpop.f32.mrf.mxu0
      %328 = vdwg.mxu0
      %v329 = vmul.f32 %v326, %v143
      %v330 = vmul.f32 %v326, %v144
      %v331 = vmul.f32 %v326, %v145
      %v332 = vmul.f32 %v326, %v146
      %v333 = vmul.f32 %v326, %v147
      %vm334 = vcmask 80896
      %v335 = vsel %vm334, %v329, 0.0
      %336 = vadd.xlane.f32.xlu0 %v335
      %v337 = vpop.xlane.xlu0 %336
      %v338 = vsel %vm334, %v330, 0.0
      %339 = vadd.xlane.f32.xlu0 %v338
      %v340 = vpop.xlane.xlu0 %339
      %v341 = vsel %vm334, %v331, 0.0
      %342 = vadd.xlane.f32.xlu0 %v341
      %v343 = vpop.xlane.xlu0 %342
      %v344 = vsel %vm334, %v332, 0.0
      %345 = vadd.xlane.f32.xlu0 %v344
      %v346 = vpop.xlane.xlu0 %345
      %v347 = vsel %vm334, %v333, 0.0
      %348 = vadd.xlane.f32.xlu0 %v347
      %v349 = vpop.xlane.xlu0 %348
      %v350 = vadd.f32 %v337, %v163
      %v351 = vadd.f32 %v340, %v164
      %v352 = vadd.f32 %v343, %v165
      %v353 = vadd.f32 %v346, %v166
      %v354 = vadd.f32 %v349, %v167
      %356 = vset.pattern.permute.xlu0 0
      %357 = vperm.xlu0 %356, %v350
      %v358 = vpop.permute.xlu0 %357
      %361 = vset.pattern.permute.xlu0 0
      %362 = vperm.xlu0 %361, %v351
      %v363 = vpop.permute.xlu0 %362
      %366 = vset.pattern.permute.xlu0 0
      %367 = vperm.xlu0 %366, %v352
      %v368 = vpop.permute.xlu0 %367
      %371 = vset.pattern.permute.xlu0 0
      %372 = vperm.xlu0 %371, %v353
      %v373 = vpop.permute.xlu0 %372
      %376 = vset.pattern.permute.xlu0 0
      %377 = vperm.xlu0 %376, %v354
      %v378 = vpop.permute.xlu0 %377
      %v381 = vsel %vm334, %v148, 0
      %v384 = vsel %vm334, %v149, 0
      %v387 = vsel %vm334, %v150, 0
      %v390 = vsel %vm334, %v151, 0
      %v393 = vsel %vm334, %v152, 0
      %v396 = vsel %vm334, %v326, 0
      %398 = vmatprep.subr.mxu0 0.0
      %399 = vmatpush1.xpose.msra.mxu0 0.0
      %400 = vmatprep.subr.mxu0 0.0
      %401 = vmatpush1.xpose.msra.mxu0 0.0
      %402 = vmatprep.subr.mxu0 0.0
      %403 = vmatpush1.xpose.msra.mxu0 0.0
      %404 = vmatprep.subr.mxu0 0.0
      %405 = vmatpush1.xpose.msra.mxu0 0.0
      %406 = vmatprep.subr.mxu0 0.0
      %407 = vmatpush1.xpose.msra.mxu0 0.0
      %408 = vmatprep.subr.mxu0 0.0
      %409 = vmatpush1.xpose.msra.mxu0 0.0
      %410 = vmatprep.subr.mxu0 0.0
      %411 = vmatpush1.xpose.msra.mxu0 0.0
      %412 = vmatprep.subr.mxu0 0.0
      %413 = vmatpush1.xpose.msra.mxu0 0.0
      %414 = vmatprep.subr.mxu0 0.0
      %415 = vmatpush1.xpose.msra.mxu0 0.0
      %416 = vmatprep.subr.mxu0 0.0
      %417 = vmatpush1.xpose.msra.mxu0 0.0
      %418 = vmatprep.subr.mxu0 0.0
      %419 = vmatpush1.xpose.msra.mxu0 0.0
      %420 = vmatprep.subr.mxu0 0.0
      %421 = vmatpush1.xpose.msra.mxu0 0.0
      %422 = vmatprep.subr.mxu0 0.0
      %423 = vmatpush1.xpose.msra.mxu0 0.0
      %424 = vmatprep.subr.mxu0 0.0
      %425 = vmatpush1.xpose.msra.mxu0 0.0
      %426 = vmatprep.subr.mxu0 0.0
      %427 = vmatpush1.xpose.msra.mxu0 0.0
      %428 = vmatprep.subr.mxu0 0.0
      %429 = vmatpush1.xpose.msra.mxu0 %v396
      %430 = vmatprep.subr.mxu0 0.0
      %431 = vmatpush2.xpose.msra.mxu0 0.0
      %432 = vmatprep.subr.mxu0 0.0
      %433 = vmatpush2.xpose.msra.mxu0 0.0
      %434 = vmatprep.subr.mxu0 0.0
      %435 = vmatpush2.xpose.msra.mxu0 0.0
      %436 = vmatprep.subr.mxu0 0.0
      %437 = vmatpush2.xpose.msra.mxu0 0.0
      %438 = vmatprep.subr.mxu0 0.0
      %439 = vmatpush2.xpose.msra.mxu0 0.0
      %440 = vmatprep.subr.mxu0 0.0
      %441 = vmatpush2.xpose.msra.mxu0 0.0
      %442 = vmatprep.subr.mxu0 0.0
      %443 = vmatpush2.xpose.msra.mxu0 0.0
      %444 = vmatprep.subr.mxu0 0.0
      %445 = vmatpush2.xpose.msra.mxu0 0.0
      %446 = vmatprep.subr.mxu0 0.0
      %447 = vmatpush2.xpose.msra.mxu0 0.0
      %448 = vmatprep.subr.mxu0 0.0
      %449 = vmatpush2.xpose.msra.mxu0 0.0
      %450 = vmatprep.subr.mxu0 0.0
      %451 = vmatpush2.xpose.msra.mxu0 0.0
      %452 = vmatprep.subr.mxu0 0.0
      %453 = vmatpush2.xpose.msra.mxu0 0.0
      %454 = vmatprep.subr.mxu0 0.0
      %455 = vmatpush2.xpose.msra.mxu0 0.0
      %456 = vmatprep.subr.mxu0 0.0
      %457 = vmatpush2.xpose.msra.mxu0 0.0
      %458 = vmatprep.subr.mxu0 0.0
      %459 = vmatpush2.xpose.msra.mxu0 0.0
      %460 = vmatprep.subr.mxu0 0.0
      %461 = vmatpush2.xpose.msra.mxu0 0.0
      %462 = vmatprep.mubr.f32.mxu0 0.0
      %463 = vmatmul.mubr.f32.gmra.mxu0 %v381
      %v464 = vpop.f32.mrf.mxu0
      %v465 = vadd.f32 %v358, %v464
      %v466 = vpop.f32.mrf.mxu0
      %467 = vmatprep.mubr.f32.mxu0 0.0
      %468 = vmatmul.mubr.f32.gmra.mxu0 %v384
      %v469 = vpop.f32.mrf.mxu0
      %v470 = vadd.f32 %v363, %v469
      %v471 = vpop.f32.mrf.mxu0
      %472 = vmatprep.mubr.f32.mxu0 0.0
      %473 = vmatmul.mubr.f32.gmra.mxu0 %v387
      %v474 = vpop.f32.mrf.mxu0
      %v475 = vadd.f32 %v368, %v474
      %v476 = vpop.f32.mrf.mxu0
      %477 = vmatprep.mubr.f32.mxu0 0.0
      %478 = vmatmul.mubr.f32.gmra.mxu0 %v390
      %v479 = vpop.f32.mrf.mxu0
      %v480 = vadd.f32 %v373, %v479
      %v481 = vpop.f32.mrf.mxu0
      %482 = vmatprep.mubr.f32.mxu0 0.0
      %483 = vmatmul.mubr.f32.gmra.mxu0 %v393
      %v484 = vpop.f32.mrf.mxu0
      %v485 = vadd.f32 %v378, %v484
      %v486 = vpop.f32.mrf.mxu0
      %487 = vdwg.mxu0
      %vm488 = vcmp.ge.f32.partialorder %v465, 0.0
      %vm489 = vcmp.ge.f32.partialorder %v470, 0.0
      %vm490 = vcmp.ge.f32.partialorder %v475, 0.0
      %vm491 = vcmp.ge.f32.partialorder %v480, 0.0
      %vm492 = vcmp.ge.f32.partialorder %v485, 0.0
      %v493 = vmul.f32 %v465, 0.01
      %v494 = vmul.f32 %v470, 0.01
      %v495 = vmul.f32 %v475, 0.01
      %v496 = vmul.f32 %v480, 0.01
      %v497 = vmul.f32 %v485, 0.01
      %v498 = vsel %vm488, %v465, %v493
      %v499 = vsel %vm489, %v470, %v494
      %v500 = vsel %vm490, %v475, %v495
      %v501 = vsel %vm491, %v480, %v496
      %v502 = vsel %vm492, %v485, %v497
      %v503 = vadd.f32 %v498, %v139
      %v504 = vadd.f32 %v499, %v139
      %v505 = vadd.f32 %v500, %v139
      %v506 = vadd.f32 %v501, %v139
      %v507 = vadd.f32 %v502, %v139
      %v508 = vsel %vm177, %v503, -inf
      %509 = vmax.xlane.f32.xlu0 %v508
      %v510 = vpop.xlane.xlu0 %509
      %v511 = vsel %vm177, %v504, -inf
      %512 = vmax.xlane.f32.xlu0 %v511
      %v513 = vpop.xlane.xlu0 %512
      %v514 = vsel %vm177, %v505, -inf
      %515 = vmax.xlane.f32.xlu0 %v514
      %v516 = vpop.xlane.xlu0 %515
      %v517 = vsel %vm177, %v506, -inf
      %518 = vmax.xlane.f32.xlu0 %v517
      %v519 = vpop.xlane.xlu0 %518
      %v520 = vsel %vm177, %v507, -inf
      %521 = vmax.xlane.f32.xlu0 %v520
      %v522 = vpop.xlane.xlu0 %521
      %v523 = vsub.f32 %v503, %v510
      %v524 = vsub.f32 %v504, %v513
      %v525 = vsub.f32 %v505, %v516
      %v526 = vsub.f32 %v506, %v519
      %v527 = vsub.f32 %v507, %v522
      %v528 = vmul.f32 %v523, 1.442695
      %v529 = vpow.pop %v528
      %v530 = vmul.f32 %v524, 1.442695
      %v531 = vpow.pop %v530
      %v532 = vmul.f32 %v525, 1.442695
      %v533 = vpow.pop %v532
      %v534 = vmul.f32 %v526, 1.442695
      %v535 = vpow.pop %v534
      %v536 = vmul.f32 %v527, 1.442695
      %v537 = vpow.pop %v536
      %v538 = vmul.f32 %v529, %v137
      %v539 = vmul.f32 %v531, %v137
      %v540 = vmul.f32 %v533, %v137
      %v541 = vmul.f32 %v535, %v137
      %v542 = vmul.f32 %v537, %v137
      %v543 = vsel %vm177, %v538, 0.0
      %544 = vadd.xlane.f32.xlu0 %v543
      %v545 = vpop.xlane.xlu0 %544
      %v546 = vsel %vm177, %v539, 0.0
      %547 = vadd.xlane.f32.xlu0 %v546
      %v548 = vpop.xlane.xlu0 %547
      %v549 = vsel %vm177, %v540, 0.0
      %550 = vadd.xlane.f32.xlu0 %v549
      %v551 = vpop.xlane.xlu0 %550
      %v552 = vsel %vm177, %v541, 0.0
      %553 = vadd.xlane.f32.xlu0 %v552
      %v554 = vpop.xlane.xlu0 %553
      %v555 = vsel %vm177, %v542, 0.0
      %556 = vadd.xlane.f32.xlu0 %v555
      %v557 = vpop.xlane.xlu0 %556
      %vm558 = vcmp.eq.f32.partialorder %v545, 0.0
      %vm559 = vcmp.eq.f32.partialorder %v548, 0.0
      %vm560 = vcmp.eq.f32.partialorder %v551, 0.0
      %vm561 = vcmp.eq.f32.partialorder %v554, 0.0
      %vm562 = vcmp.eq.f32.partialorder %v557, 0.0
      %v563 = vsel %vm558, 1.0, %v545
      %v564 = vsel %vm559, 1.0, %v548
      %v565 = vsel %vm560, 1.0, %v551
      %v566 = vsel %vm561, 1.0, %v554
      %v567 = vsel %vm562, 1.0, %v557
      %v568 = vrcp.pop %v563
      %v569 = vrcp.pop %v564
      %v570 = vrcp.pop %v565
      %v571 = vrcp.pop %v566
      %v572 = vrcp.pop %v567
      %v573 = vmul.f32 %v538, %v568
      %v574 = vmul.f32 %v539, %v569
      %v575 = vmul.f32 %v540, %v570
      %v576 = vmul.f32 %v541, %v571
      %v577 = vmul.f32 %v542, %v572
      %v579 = vsel %vm177, %v573, 0
      %v582 = vsel %vm177, %v574, 0
      %v585 = vsel %vm177, %v575, 0
      %v588 = vsel %vm177, %v576, 0
      %v591 = vsel %vm177, %v577, 0
      %593 = vmatprep.subr.mxu0 0.0
      %594 = vmatpush1.msra.mxu0 0.0
      %595 = vmatprep.subr.mxu0 0.0
      %596 = vmatpush1.msra.mxu0 0.0
      %597 = vmatprep.subr.mxu0 0.0
      %598 = vmatpush1.msra.mxu0 0.0
      %599 = vmatprep.subr.mxu0 0.0
      %600 = vmatpush1.msra.mxu0 0.0
      %601 = vmatprep.subr.mxu0 0.0
      %602 = vmatpush1.msra.mxu0 0.0
      %603 = vmatprep.subr.mxu0 0.0
      %604 = vmatpush1.msra.mxu0 0.0
      %605 = vmatprep.subr.mxu0 0.0
      %606 = vmatpush1.msra.mxu0 0.0
      %607 = vmatprep.subr.mxu0 0.0
      %608 = vmatpush1.msra.mxu0 0.0
      %609 = vmatprep.subr.mxu0 0.0
      %610 = vmatpush1.msra.mxu0 0.0
      %611 = vmatprep.subr.mxu0 0.0
      %612 = vmatpush1.msra.mxu0 0.0
      %613 = vmatprep.subr.mxu0 0.0
      %614 = vmatpush1.msra.mxu0 0.0
      %615 = vmatprep.subr.mxu0 0.0
      %616 = vmatpush1.msra.mxu0 0.0
      %617 = vmatprep.subr.mxu0 0.0
      %618 = vmatpush1.msra.mxu0 0.0
      %619 = vmatprep.subr.mxu0 0.0
      %620 = vmatpush1.msra.mxu0 0.0
      %621 = vmatprep.subr.mxu0 0.0
      %622 = vmatpush1.msra.mxu0 0.0
      %623 = vmatprep.subr.mxu0 0.0
      %624 = vmatpush1.msra.mxu0 %v326
      %625 = vmatprep.subr.mxu0 0.0
      %626 = vmatpush2.msra.mxu0 0.0
      %627 = vmatprep.subr.mxu0 0.0
      %628 = vmatpush2.msra.mxu0 0.0
      %629 = vmatprep.subr.mxu0 0.0
      %630 = vmatpush2.msra.mxu0 0.0
      %631 = vmatprep.subr.mxu0 0.0
      %632 = vmatpush2.msra.mxu0 0.0
      %633 = vmatprep.subr.mxu0 0.0
      %634 = vmatpush2.msra.mxu0 0.0
      %635 = vmatprep.subr.mxu0 0.0
      %636 = vmatpush2.msra.mxu0 0.0
      %637 = vmatprep.subr.mxu0 0.0
      %638 = vmatpush2.msra.mxu0 0.0
      %639 = vmatprep.subr.mxu0 0.0
      %640 = vmatpush2.msra.mxu0 0.0
      %641 = vmatprep.subr.mxu0 0.0
      %642 = vmatpush2.msra.mxu0 0.0
      %643 = vmatprep.subr.mxu0 0.0
      %644 = vmatpush2.msra.mxu0 0.0
      %645 = vmatprep.subr.mxu0 0.0
      %646 = vmatpush2.msra.mxu0 0.0
      %647 = vmatprep.subr.mxu0 0.0
      %648 = vmatpush2.msra.mxu0 0.0
      %649 = vmatprep.subr.mxu0 0.0
      %650 = vmatpush2.msra.mxu0 0.0
      %651 = vmatprep.subr.mxu0 0.0
      %652 = vmatpush2.msra.mxu0 0.0
      %653 = vmatprep.subr.mxu0 0.0
      %654 = vmatpush2.msra.mxu0 0.0
      %655 = vmatprep.subr.mxu0 0.0
      %656 = vmatpush2.msra.mxu0 0.0
      %657 = vmatprep.mubr.f32.mxu0 0.0
      %658 = vmatmul.mubr.f32.gmra.mxu0 %v579
      %v659 = vpop.f32.mrf.mxu0
      %v660 = vadd.f32 0.0, %v659
      %v661 = vpop.f32.mrf.mxu0
      %662 = vmatprep.mubr.f32.mxu0 0.0
      %663 = vmatmul.mubr.f32.gmra.mxu0 %v582
      %v664 = vpop.f32.mrf.mxu0
      %v665 = vadd.f32 0.0, %v664
      %v666 = vpop.f32.mrf.mxu0
      %667 = vmatprep.mubr.f32.mxu0 0.0
      %668 = vmatmul.mubr.f32.gmra.mxu0 %v585
      %v669 = vpop.f32.mrf.mxu0
      %v670 = vadd.f32 0.0, %v669
      %v671 = vpop.f32.mrf.mxu0
      %672 = vmatprep.mubr.f32.mxu0 0.0
      %673 = vmatmul.mubr.f32.gmra.mxu0 %v588
      %v674 = vpop.f32.mrf.mxu0
      %v675 = vadd.f32 0.0, %v674
      %v676 = vpop.f32.mrf.mxu0
      %677 = vmatprep.mubr.f32.mxu0 0.0
      %678 = vmatmul.mubr.f32.gmra.mxu0 %v591
      %v679 = vpop.f32.mrf.mxu0
      %v680 = vadd.f32 0.0, %v679
      %v681 = vpop.f32.mrf.mxu0
      %682 = vdwg.mxu0
      %v683 = vadd.f32 %v326, %v660
      %v684 = vadd.f32 %v326, %v665
      %v685 = vadd.f32 %v326, %v670
      %v686 = vadd.f32 %v326, %v675
      %v687 = vadd.f32 %v326, %v680
      %vm688 = vcmp.gt.f32.partialorder %v683, 0.0
      %vm689 = vcmp.gt.f32.partialorder %v684, 0.0
      %vm690 = vcmp.gt.f32.partialorder %v685, 0.0
      %vm691 = vcmp.gt.f32.partialorder %v686, 0.0
      %vm692 = vcmp.gt.f32.partialorder %v687, 0.0
      %v693 = vmin.f32 %v683, 0.0
      %v694 = vmin.f32 %v684, 0.0
      %v695 = vmin.f32 %v685, 0.0
      %v696 = vmin.f32 %v686, 0.0
      %v697 = vmin.f32 %v687, 0.0
      %v698 = vmul.f32 %v693, 1.442695
      %v699 = vpow.pop %v698
      %v700 = vmul.f32 %v694, 1.442695
      %v701 = vpow.pop %v700
      %v702 = vmul.f32 %v695, 1.442695
      %v703 = vpow.pop %v702
      %v704 = vmul.f32 %v696, 1.442695
      %v705 = vpow.pop %v704
      %v706 = vmul.f32 %v697, 1.442695
      %v707 = vpow.pop %v706
      %v708 = vsub.f32 %v699, 1.0
      %v709 = vsub.f32 %v701, 1.0
      %v710 = vsub.f32 %v703, 1.0
      %v711 = vsub.f32 %v705, 1.0
      %v712 = vsub.f32 %v707, 1.0
      %v713 = vsel %vm688, %v683, %v708
      %v714 = vsel %vm689, %v684, %v709
      %v715 = vsel %vm690, %v685, %v710
      %v716 = vsel %vm691, %v686, %v711
      %v717 = vsel %vm692, %v687, %v712
      %v718 = vld [vmem:[%s1 + $0x108] sm:$0xff]
      %v719 = vld [vmem:[%s1 + $0x110] sm:$0x3]
      %v721 = vsel %vm334, %v713, 0
      %vm723 = vcmask 1041408
      %v725 = vsel %vm723, %v719, 0
      %727 = vmatprep.subr.mxu0 0.0
      %728 = vmatpush1.msra.mxu0 0.0
      %729 = vmatprep.subr.mxu0 0.0
      %730 = vmatpush1.msra.mxu0 0.0
      %731 = vmatprep.subr.mxu0 0.0
      %732 = vmatpush1.msra.mxu0 0.0
      %733 = vmatprep.subr.mxu0 0.0
      %734 = vmatpush1.msra.mxu0 0.0
      %735 = vmatprep.subr.mxu0 0.0
      %736 = vmatpush1.msra.mxu0 0.0
      %737 = vmatprep.subr.mxu0 0.0
      %738 = vmatpush1.msra.mxu0 0.0
      %739 = vmatprep.subr.mxu0 0.0
      %740 = vmatpush1.msra.mxu0 0.0
      %741 = vmatprep.subr.mxu0 0.0
      %742 = vmatpush1.msra.mxu0 0.0
      %743 = vmatprep.subr.mxu0 0.0
      %744 = vmatpush1.msra.mxu0 0.0
      %745 = vmatprep.subr.mxu0 0.0
      %746 = vmatpush1.msra.mxu0 0.0
      %747 = vmatprep.subr.mxu0 0.0
      %748 = vmatpush1.msra.mxu0 0.0
      %749 = vmatprep.subr.mxu0 0.0
      %750 = vmatpush1.msra.mxu0 0.0
      %751 = vmatprep.subr.mxu0 0.0
      %752 = vmatpush1.msra.mxu0 0.0
      %753 = vmatprep.subr.mxu0 0.0
      %754 = vmatpush1.msra.mxu0 0.0
      %755 = vmatprep.subr.mxu0 0.0
      %756 = vmatpush1.msra.mxu0 %v725
      %757 = vmatprep.subr.mxu0 0.0
      %758 = vmatpush1.msra.mxu0 %v718
      %759 = vmatprep.subr.mxu0 0.0
      %760 = vmatpush2.msra.mxu0 0.0
      %761 = vmatprep.subr.mxu0 0.0
      %762 = vmatpush2.msra.mxu0 0.0
      %763 = vmatprep.subr.mxu0 0.0
      %764 = vmatpush2.msra.mxu0 0.0
      %765 = vmatprep.subr.mxu0 0.0
      %766 = vmatpush2.msra.mxu0 0.0
      %767 = vmatprep.subr.mxu0 0.0
      %768 = vmatpush2.msra.mxu0 0.0
      %769 = vmatprep.subr.mxu0 0.0
      %770 = vmatpush2.msra.mxu0 0.0
      %771 = vmatprep.subr.mxu0 0.0
      %772 = vmatpush2.msra.mxu0 0.0
      %773 = vmatprep.subr.mxu0 0.0
      %774 = vmatpush2.msra.mxu0 0.0
      %775 = vmatprep.subr.mxu0 0.0
      %776 = vmatpush2.msra.mxu0 0.0
      %777 = vmatprep.subr.mxu0 0.0
      %778 = vmatpush2.msra.mxu0 0.0
      %779 = vmatprep.subr.mxu0 0.0
      %780 = vmatpush2.msra.mxu0 0.0
      %781 = vmatprep.subr.mxu0 0.0
      %782 = vmatpush2.msra.mxu0 0.0
      %783 = vmatprep.subr.mxu0 0.0
      %784 = vmatpush2.msra.mxu0 0.0
      %785 = vmatprep.subr.mxu0 0.0
      %786 = vmatpush2.msra.mxu0 0.0
      %787 = vmatprep.subr.mxu0 0.0
      %788 = vmatpush2.msra.mxu0 0.0
      %789 = vmatprep.subr.mxu0 0.0
      %790 = vmatpush2.msra.mxu0 0.0
      %791 = vmatprep.mubr.f32.mxu0 0.0
      %792 = vmatmul.mubr.f32.gmra.mxu0 %v721
      %v793 = vpop.f32.mrf.mxu0
      %v794 = vadd.f32 0.0, %v793
      %v795 = vpop.f32.mrf.mxu0
      %796 = vdwg.mxu0
      %v797 = vlaneseq
      %v798 = vshrl.u32 %v797, 7
      %v799 = vsub.s32 0, %v798
      %v800 = vrot.slane %v174, %v799
      %v801 = vadd.f32 %v800, %v794
      %v802 = vld [vmem:[%s1 + $0x118] sm:$0xff]
      %v803 = vld [vmem:[%s1 + $0x120] sm:$0x3]
      %v805 = vsel %vm334, %v714, 0
      %v808 = vsel %vm723, %v803, 0
      %810 = vmatprep.subr.mxu0 0.0
      %811 = vmatpush1.msra.mxu0 0.0
      %812 = vmatprep.subr.mxu0 0.0
      %813 = vmatpush1.msra.mxu0 0.0
      %814 = vmatprep.subr.mxu0 0.0
      %815 = vmatpush1.msra.mxu0 0.0
      %816 = vmatprep.subr.mxu0 0.0
      %817 = vmatpush1.msra.mxu0 0.0
      %818 = vmatprep.subr.mxu0 0.0
      %819 = vmatpush1.msra.mxu0 0.0
      %820 = vmatprep.subr.mxu0 0.0
      %821 = vmatpush1.msra.mxu0 0.0
      %822 = vmatprep.subr.mxu0 0.0
      %823 = vmatpush1.msra.mxu0 0.0
      %824 = vmatprep.subr.mxu0 0.0
      %825 = vmatpush1.msra.mxu0 0.0
      %826 = vmatprep.subr.mxu0 0.0
      %827 = vmatpush1.msra.mxu0 0.0
      %828 = vmatprep.subr.mxu0 0.0
      %829 = vmatpush1.msra.mxu0 0.0
      %830 = vmatprep.subr.mxu0 0.0
      %831 = vmatpush1.msra.mxu0 0.0
      %832 = vmatprep.subr.mxu0 0.0
      %833 = vmatpush1.msra.mxu0 0.0
      %834 = vmatprep.subr.mxu0 0.0
      %835 = vmatpush1.msra.mxu0 0.0
      %836 = vmatprep.subr.mxu0 0.0
      %837 = vmatpush1.msra.mxu0 0.0
      %838 = vmatprep.subr.mxu0 0.0
      %839 = vmatpush1.msra.mxu0 %v808
      %840 = vmatprep.subr.mxu0 0.0
      %841 = vmatpush1.msra.mxu0 %v802
      %842 = vmatprep.subr.mxu0 0.0
      %843 = vmatpush2.msra.mxu0 0.0
      %844 = vmatprep.subr.mxu0 0.0
      %845 = vmatpush2.msra.mxu0 0.0
      %846 = vmatprep.subr.mxu0 0.0
      %847 = vmatpush2.msra.mxu0 0.0
      %848 = vmatprep.subr.mxu0 0.0
      %849 = vmatpush2.msra.mxu0 0.0
      %850 = vmatprep.subr.mxu0 0.0
      %851 = vmatpush2.msra.mxu0 0.0
      %852 = vmatprep.subr.mxu0 0.0
      %853 = vmatpush2.msra.mxu0 0.0
      %854 = vmatprep.subr.mxu0 0.0
      %855 = vmatpush2.msra.mxu0 0.0
      %856 = vmatprep.subr.mxu0 0.0
      %857 = vmatpush2.msra.mxu0 0.0
      %858 = vmatprep.subr.mxu0 0.0
      %859 = vmatpush2.msra.mxu0 0.0
      %860 = vmatprep.subr.mxu0 0.0
      %861 = vmatpush2.msra.mxu0 0.0
      %862 = vmatprep.subr.mxu0 0.0
      %863 = vmatpush2.msra.mxu0 0.0
      %864 = vmatprep.subr.mxu0 0.0
      %865 = vmatpush2.msra.mxu0 0.0
      %866 = vmatprep.subr.mxu0 0.0
      %867 = vmatpush2.msra.mxu0 0.0
      %868 = vmatprep.subr.mxu0 0.0
      %869 = vmatpush2.msra.mxu0 0.0
      %870 = vmatprep.subr.mxu0 0.0
      %871 = vmatpush2.msra.mxu0 0.0
      %872 = vmatprep.subr.mxu0 0.0
      %873 = vmatpush2.msra.mxu0 0.0
      %874 = vmatprep.mubr.f32.mxu0 0.0
      %875 = vmatmul.mubr.f32.gmra.mxu0 %v805
      %v876 = vpop.f32.mrf.mxu0
      %v877 = vadd.f32 0.0, %v876
      %v878 = vpop.f32.mrf.mxu0
      %879 = vdwg.mxu0
      %v880 = vadd.f32 %v801, %v877
      %v881 = vld [vmem:[%s1 + $0x128] sm:$0xff]
      %v882 = vld [vmem:[%s1 + $0x130] sm:$0x3]
      %v884 = vsel %vm334, %v715, 0
      %v887 = vsel %vm723, %v882, 0
      %889 = vmatprep.subr.mxu0 0.0
      %890 = vmatpush1.msra.mxu0 0.0
      %891 = vmatprep.subr.mxu0 0.0
      %892 = vmatpush1.msra.mxu0 0.0
      %893 = vmatprep.subr.mxu0 0.0
      %894 = vmatpush1.msra.mxu0 0.0
      %895 = vmatprep.subr.mxu0 0.0
      %896 = vmatpush1.msra.mxu0 0.0
      %897 = vmatprep.subr.mxu0 0.0
      %898 = vmatpush1.msra.mxu0 0.0
      %899 = vmatprep.subr.mxu0 0.0
      %900 = vmatpush1.msra.mxu0 0.0
      %901 = vmatprep.subr.mxu0 0.0
      %902 = vmatpush1.msra.mxu0 0.0
      %903 = vmatprep.subr.mxu0 0.0
      %904 = vmatpush1.msra.mxu0 0.0
      %905 = vmatprep.subr.mxu0 0.0
      %906 = vmatpush1.msra.mxu0 0.0
      %907 = vmatprep.subr.mxu0 0.0
      %908 = vmatpush1.msra.mxu0 0.0
      %909 = vmatprep.subr.mxu0 0.0
      %910 = vmatpush1.msra.mxu0 0.0
      %911 = vmatprep.subr.mxu0 0.0
      %912 = vmatpush1.msra.mxu0 0.0
      %913 = vmatprep.subr.mxu0 0.0
      %914 = vmatpush1.msra.mxu0 0.0
      %915 = vmatprep.subr.mxu0 0.0
      %916 = vmatpush1.msra.mxu0 0.0
      %917 = vmatprep.subr.mxu0 0.0
      %918 = vmatpush1.msra.mxu0 %v887
      %919 = vmatprep.subr.mxu0 0.0
      %920 = vmatpush1.msra.mxu0 %v881
      %921 = vmatprep.subr.mxu0 0.0
      %922 = vmatpush2.msra.mxu0 0.0
      %923 = vmatprep.subr.mxu0 0.0
      %924 = vmatpush2.msra.mxu0 0.0
      %925 = vmatprep.subr.mxu0 0.0
      %926 = vmatpush2.msra.mxu0 0.0
      %927 = vmatprep.subr.mxu0 0.0
      %928 = vmatpush2.msra.mxu0 0.0
      %929 = vmatprep.subr.mxu0 0.0
      %930 = vmatpush2.msra.mxu0 0.0
      %931 = vmatprep.subr.mxu0 0.0
      %932 = vmatpush2.msra.mxu0 0.0
      %933 = vmatprep.subr.mxu0 0.0
      %934 = vmatpush2.msra.mxu0 0.0
      %935 = vmatprep.subr.mxu0 0.0
      %936 = vmatpush2.msra.mxu0 0.0
      %937 = vmatprep.subr.mxu0 0.0
      %938 = vmatpush2.msra.mxu0 0.0
      %939 = vmatprep.subr.mxu0 0.0
      %940 = vmatpush2.msra.mxu0 0.0
      %941 = vmatprep.subr.mxu0 0.0
      %942 = vmatpush2.msra.mxu0 0.0
      %943 = vmatprep.subr.mxu0 0.0
      %944 = vmatpush2.msra.mxu0 0.0
      %945 = vmatprep.subr.mxu0 0.0
      %946 = vmatpush2.msra.mxu0 0.0
      %947 = vmatprep.subr.mxu0 0.0
      %948 = vmatpush2.msra.mxu0 0.0
      %949 = vmatprep.subr.mxu0 0.0
      %950 = vmatpush2.msra.mxu0 0.0
      %951 = vmatprep.subr.mxu0 0.0
      %952 = vmatpush2.msra.mxu0 0.0
      %953 = vmatprep.mubr.f32.mxu0 0.0
      %954 = vmatmul.mubr.f32.gmra.mxu0 %v884
      %v955 = vpop.f32.mrf.mxu0
      %v956 = vadd.f32 0.0, %v955
      %v957 = vpop.f32.mrf.mxu0
      %958 = vdwg.mxu0
      %v959 = vadd.f32 %v880, %v956
      %v960 = vld [vmem:[%s1 + $0x138] sm:$0xff]
      %v961 = vld [vmem:[%s1 + $0x140] sm:$0x3]
      %v963 = vsel %vm334, %v716, 0
      %v966 = vsel %vm723, %v961, 0
      %968 = vmatprep.subr.mxu0 0.0
      %969 = vmatpush1.msra.mxu0 0.0
      %970 = vmatprep.subr.mxu0 0.0
      %971 = vmatpush1.msra.mxu0 0.0
      %972 = vmatprep.subr.mxu0 0.0
      %973 = vmatpush1.msra.mxu0 0.0
      %974 = vmatprep.subr.mxu0 0.0
      %975 = vmatpush1.msra.mxu0 0.0
      %976 = vmatprep.subr.mxu0 0.0
      %977 = vmatpush1.msra.mxu0 0.0
      %978 = vmatprep.subr.mxu0 0.0
      %979 = vmatpush1.msra.mxu0 0.0
      %980 = vmatprep.subr.mxu0 0.0
      %981 = vmatpush1.msra.mxu0 0.0
      %982 = vmatprep.subr.mxu0 0.0
      %983 = vmatpush1.msra.mxu0 0.0
      %984 = vmatprep.subr.mxu0 0.0
      %985 = vmatpush1.msra.mxu0 0.0
      %986 = vmatprep.subr.mxu0 0.0
      %987 = vmatpush1.msra.mxu0 0.0
      %988 = vmatprep.subr.mxu0 0.0
      %989 = vmatpush1.msra.mxu0 0.0
      %990 = vmatprep.subr.mxu0 0.0
      %991 = vmatpush1.msra.mxu0 0.0
      %992 = vmatprep.subr.mxu0 0.0
      %993 = vmatpush1.msra.mxu0 0.0
      %994 = vmatprep.subr.mxu0 0.0
      %995 = vmatpush1.msra.mxu0 0.0
      %996 = vmatprep.subr.mxu0 0.0
      %997 = vmatpush1.msra.mxu0 %v966
      %998 = vmatprep.subr.mxu0 0.0
      %999 = vmatpush1.msra.mxu0 %v960
      %1000 = vmatprep.subr.mxu0 0.0
      %1001 = vmatpush2.msra.mxu0 0.0
      %1002 = vmatprep.subr.mxu0 0.0
      %1003 = vmatpush2.msra.mxu0 0.0
      %1004 = vmatprep.subr.mxu0 0.0
      %1005 = vmatpush2.msra.mxu0 0.0
      %1006 = vmatprep.subr.mxu0 0.0
      %1007 = vmatpush2.msra.mxu0 0.0
      %1008 = vmatprep.subr.mxu0 0.0
      %1009 = vmatpush2.msra.mxu0 0.0
      %1010 = vmatprep.subr.mxu0 0.0
      %1011 = vmatpush2.msra.mxu0 0.0
      %1012 = vmatprep.subr.mxu0 0.0
      %1013 = vmatpush2.msra.mxu0 0.0
      %1014 = vmatprep.subr.mxu0 0.0
      %1015 = vmatpush2.msra.mxu0 0.0
      %1016 = vmatprep.subr.mxu0 0.0
      %1017 = vmatpush2.msra.mxu0 0.0
      %1018 = vmatprep.subr.mxu0 0.0
      %1019 = vmatpush2.msra.mxu0 0.0
      %1020 = vmatprep.subr.mxu0 0.0
      %1021 = vmatpush2.msra.mxu0 0.0
      %1022 = vmatprep.subr.mxu0 0.0
      %1023 = vmatpush2.msra.mxu0 0.0
      %1024 = vmatprep.subr.mxu0 0.0
      %1025 = vmatpush2.msra.mxu0 0.0
      %1026 = vmatprep.subr.mxu0 0.0
      %1027 = vmatpush2.msra.mxu0 0.0
      %1028 = vmatprep.subr.mxu0 0.0
      %1029 = vmatpush2.msra.mxu0 0.0
      %1030 = vmatprep.subr.mxu0 0.0
      %1031 = vmatpush2.msra.mxu0 0.0
      %1032 = vmatprep.mubr.f32.mxu0 0.0
      %1033 = vmatmul.mubr.f32.gmra.mxu0 %v963
      %v1034 = vpop.f32.mrf.mxu0
      %v1035 = vadd.f32 0.0, %v1034
      %v1036 = vpop.f32.mrf.mxu0
      %1037 = vdwg.mxu0
      %v1038 = vadd.f32 %v959, %v1035
      %v1039 = vld [vmem:[%s1 + $0x148] sm:$0xff]
      %v1040 = vld [vmem:[%s1 + $0x150] sm:$0x3]
      %v1042 = vsel %vm334, %v717, 0
      %v1045 = vsel %vm723, %v1040, 0
      %1047 = vmatprep.subr.mxu0 0.0
      %1048 = vmatpush1.msra.mxu0 0.0
      %1049 = vmatprep.subr.mxu0 0.0
      %1050 = vmatpush1.msra.mxu0 0.0
      %1051 = vmatprep.subr.mxu0 0.0
      %1052 = vmatpush1.msra.mxu0 0.0
      %1053 = vmatprep.subr.mxu0 0.0
      %1054 = vmatpush1.msra.mxu0 0.0
      %1055 = vmatprep.subr.mxu0 0.0
      %1056 = vmatpush1.msra.mxu0 0.0
      %1057 = vmatprep.subr.mxu0 0.0
      %1058 = vmatpush1.msra.mxu0 0.0
      %1059 = vmatprep.subr.mxu0 0.0
      %1060 = vmatpush1.msra.mxu0 0.0
      %1061 = vmatprep.subr.mxu0 0.0
      %1062 = vmatpush1.msra.mxu0 0.0
      %1063 = vmatprep.subr.mxu0 0.0
      %1064 = vmatpush1.msra.mxu0 0.0
      %1065 = vmatprep.subr.mxu0 0.0
      %1066 = vmatpush1.msra.mxu0 0.0
      %1067 = vmatprep.subr.mxu0 0.0
      %1068 = vmatpush1.msra.mxu0 0.0
      %1069 = vmatprep.subr.mxu0 0.0
      %1070 = vmatpush1.msra.mxu0 0.0
      %1071 = vmatprep.subr.mxu0 0.0
      %1072 = vmatpush1.msra.mxu0 0.0
      %1073 = vmatprep.subr.mxu0 0.0
      %1074 = vmatpush1.msra.mxu0 0.0
      %1075 = vmatprep.subr.mxu0 0.0
      %1076 = vmatpush1.msra.mxu0 %v1045
      %1077 = vmatprep.subr.mxu0 0.0
      %1078 = vmatpush1.msra.mxu0 %v1039
      %1079 = vmatprep.subr.mxu0 0.0
      %1080 = vmatpush2.msra.mxu0 0.0
      %1081 = vmatprep.subr.mxu0 0.0
      %1082 = vmatpush2.msra.mxu0 0.0
      %1083 = vmatprep.subr.mxu0 0.0
      %1084 = vmatpush2.msra.mxu0 0.0
      %1085 = vmatprep.subr.mxu0 0.0
      %1086 = vmatpush2.msra.mxu0 0.0
      %1087 = vmatprep.subr.mxu0 0.0
      %1088 = vmatpush2.msra.mxu0 0.0
      %1089 = vmatprep.subr.mxu0 0.0
      %1090 = vmatpush2.msra.mxu0 0.0
      %1091 = vmatprep.subr.mxu0 0.0
      %1092 = vmatpush2.msra.mxu0 0.0
      %1093 = vmatprep.subr.mxu0 0.0
      %1094 = vmatpush2.msra.mxu0 0.0
      %1095 = vmatprep.subr.mxu0 0.0
      %1096 = vmatpush2.msra.mxu0 0.0
      %1097 = vmatprep.subr.mxu0 0.0
      %1098 = vmatpush2.msra.mxu0 0.0
      %1099 = vmatprep.subr.mxu0 0.0
      %1100 = vmatpush2.msra.mxu0 0.0
      %1101 = vmatprep.subr.mxu0 0.0
      %1102 = vmatpush2.msra.mxu0 0.0
      %1103 = vmatprep.subr.mxu0 0.0
      %1104 = vmatpush2.msra.mxu0 0.0
      %1105 = vmatprep.subr.mxu0 0.0
      %1106 = vmatpush2.msra.mxu0 0.0
      %1107 = vmatprep.subr.mxu0 0.0
      %1108 = vmatpush2.msra.mxu0 0.0
      %1109 = vmatprep.subr.mxu0 0.0
      %1110 = vmatpush2.msra.mxu0 0.0
      %1111 = vmatprep.mubr.f32.mxu0 0.0
      %1112 = vmatmul.mubr.f32.gmra.mxu0 %v1042
      %v1113 = vpop.f32.mrf.mxu0
      %v1114 = vadd.f32 0.0, %v1113
      %v1115 = vpop.f32.mrf.mxu0
      %1116 = vdwg.mxu0
      %v1117 = vadd.f32 %v1038, %v1114
      %v1118 = vmul.f32 %v1117, %v153
      %v1119 = vmul.f32 %v1117, %v154
      %v1120 = vmul.f32 %v1117, %v155
      %v1121 = vmul.f32 %v1117, %v156
      %v1122 = vmul.f32 %v1117, %v157
      %v1123 = vsel %vm334, %v1118, 0.0
      %1124 = vadd.xlane.f32.xlu0 %v1123
      %v1125 = vpop.xlane.xlu0 %1124
      %v1126 = vsel %vm334, %v1119, 0.0
      %1127 = vadd.xlane.f32.xlu0 %v1126
      %v1128 = vpop.xlane.xlu0 %1127
      %v1129 = vsel %vm334, %v1120, 0.0
      %1130 = vadd.xlane.f32.xlu0 %v1129
      %v1131 = vpop.xlane.xlu0 %1130
      %v1132 = vsel %vm334, %v1121, 0.0
      %1133 = vadd.xlane.f32.xlu0 %v1132
      %v1134 = vpop.xlane.xlu0 %1133
      %v1135 = vsel %vm334, %v1122, 0.0
      %1136 = vadd.xlane.f32.xlu0 %v1135
      %v1137 = vpop.xlane.xlu0 %1136
      %v1138 = vadd.f32 %v1125, %v168
      %v1139 = vadd.f32 %v1128, %v169
      %v1140 = vadd.f32 %v1131, %v170
      %v1141 = vadd.f32 %v1134, %v171
      %v1142 = vadd.f32 %v1137, %v172
      %1144 = vset.pattern.permute.xlu0 0
      %1145 = vperm.xlu0 %1144, %v1138
      %v1146 = vpop.permute.xlu0 %1145
      %1149 = vset.pattern.permute.xlu0 0
      %1150 = vperm.xlu0 %1149, %v1139
      %v1151 = vpop.permute.xlu0 %1150
      %1154 = vset.pattern.permute.xlu0 0
      %1155 = vperm.xlu0 %1154, %v1140
      %v1156 = vpop.permute.xlu0 %1155
      %1159 = vset.pattern.permute.xlu0 0
      %1160 = vperm.xlu0 %1159, %v1141
      %v1161 = vpop.permute.xlu0 %1160
      %1164 = vset.pattern.permute.xlu0 0
      %1165 = vperm.xlu0 %1164, %v1142
      %v1166 = vpop.permute.xlu0 %1165
      %v1169 = vsel %vm334, %v158, 0
      %v1172 = vsel %vm334, %v159, 0
      %v1175 = vsel %vm334, %v160, 0
      %v1178 = vsel %vm334, %v161, 0
      %v1181 = vsel %vm334, %v162, 0
      %v1184 = vsel %vm334, %v1117, 0
      %1186 = vmatprep.subr.mxu0 0.0
      %1187 = vmatpush1.xpose.msra.mxu0 0.0
      %1188 = vmatprep.subr.mxu0 0.0
      %1189 = vmatpush1.xpose.msra.mxu0 0.0
      %1190 = vmatprep.subr.mxu0 0.0
      %1191 = vmatpush1.xpose.msra.mxu0 0.0
      %1192 = vmatprep.subr.mxu0 0.0
      %1193 = vmatpush1.xpose.msra.mxu0 0.0
      %1194 = vmatprep.subr.mxu0 0.0
      %1195 = vmatpush1.xpose.msra.mxu0 0.0
      %1196 = vmatprep.subr.mxu0 0.0
      %1197 = vmatpush1.xpose.msra.mxu0 0.0
      %1198 = vmatprep.subr.mxu0 0.0
      %1199 = vmatpush1.xpose.msra.mxu0 0.0
      %1200 = vmatprep.subr.mxu0 0.0
      %1201 = vmatpush1.xpose.msra.mxu0 0.0
      %1202 = vmatprep.subr.mxu0 0.0
      %1203 = vmatpush1.xpose.msra.mxu0 0.0
      %1204 = vmatprep.subr.mxu0 0.0
      %1205 = vmatpush1.xpose.msra.mxu0 0.0
      %1206 = vmatprep.subr.mxu0 0.0
      %1207 = vmatpush1.xpose.msra.mxu0 0.0
      %1208 = vmatprep.subr.mxu0 0.0
      %1209 = vmatpush1.xpose.msra.mxu0 0.0
      %1210 = vmatprep.subr.mxu0 0.0
      %1211 = vmatpush1.xpose.msra.mxu0 0.0
      %1212 = vmatprep.subr.mxu0 0.0
      %1213 = vmatpush1.xpose.msra.mxu0 0.0
      %1214 = vmatprep.subr.mxu0 0.0
      %1215 = vmatpush1.xpose.msra.mxu0 0.0
      %1216 = vmatprep.subr.mxu0 0.0
      %1217 = vmatpush1.xpose.msra.mxu0 %v1184
      %1218 = vmatprep.subr.mxu0 0.0
      %1219 = vmatpush2.xpose.msra.mxu0 0.0
      %1220 = vmatprep.subr.mxu0 0.0
      %1221 = vmatpush2.xpose.msra.mxu0 0.0
      %1222 = vmatprep.subr.mxu0 0.0
      %1223 = vmatpush2.xpose.msra.mxu0 0.0
      %1224 = vmatprep.subr.mxu0 0.0
      %1225 = vmatpush2.xpose.msra.mxu0 0.0
      %1226 = vmatprep.subr.mxu0 0.0
      %1227 = vmatpush2.xpose.msra.mxu0 0.0
      %1228 = vmatprep.subr.mxu0 0.0
      %1229 = vmatpush2.xpose.msra.mxu0 0.0
      %1230 = vmatprep.subr.mxu0 0.0
      %1231 = vmatpush2.xpose.msra.mxu0 0.0
      %1232 = vmatprep.subr.mxu0 0.0
      %1233 = vmatpush2.xpose.msra.mxu0 0.0
      %1234 = vmatprep.subr.mxu0 0.0
      %1235 = vmatpush2.xpose.msra.mxu0 0.0
      %1236 = vmatprep.subr.mxu0 0.0
      %1237 = vmatpush2.xpose.msra.mxu0 0.0
      %1238 = vmatprep.subr.mxu0 0.0
      %1239 = vmatpush2.xpose.msra.mxu0 0.0
      %1240 = vmatprep.subr.mxu0 0.0
      %1241 = vmatpush2.xpose.msra.mxu0 0.0
      %1242 = vmatprep.subr.mxu0 0.0
      %1243 = vmatpush2.xpose.msra.mxu0 0.0
      %1244 = vmatprep.subr.mxu0 0.0
      %1245 = vmatpush2.xpose.msra.mxu0 0.0
      %1246 = vmatprep.subr.mxu0 0.0
      %1247 = vmatpush2.xpose.msra.mxu0 0.0
      %1248 = vmatprep.subr.mxu0 0.0
      %1249 = vmatpush2.xpose.msra.mxu0 0.0
      %1250 = vmatprep.mubr.f32.mxu0 0.0
      %1251 = vmatmul.mubr.f32.gmra.mxu0 %v1169
      %v1252 = vpop.f32.mrf.mxu0
      %v1253 = vadd.f32 %v1146, %v1252
      %v1254 = vpop.f32.mrf.mxu0
      %1255 = vmatprep.mubr.f32.mxu0 0.0
      %1256 = vmatmul.mubr.f32.gmra.mxu0 %v1172
      %v1257 = vpop.f32.mrf.mxu0
      %v1258 = vadd.f32 %v1151, %v1257
      %v1259 = vpop.f32.mrf.mxu0
      %1260 = vmatprep.mubr.f32.mxu0 0.0
      %1261 = vmatmul.mubr.f32.gmra.mxu0 %v1175
      %v1262 = vpop.f32.mrf.mxu0
      %v1263 = vadd.f32 %v1156, %v1262
      %v1264 = vpop.f32.mrf.mxu0
      %1265 = vmatprep.mubr.f32.mxu0 0.0
      %1266 = vmatmul.mubr.f32.gmra.mxu0 %v1178
      %v1267 = vpop.f32.mrf.mxu0
      %v1268 = vadd.f32 %v1161, %v1267
      %v1269 = vpop.f32.mrf.mxu0
      %1270 = vmatprep.mubr.f32.mxu0 0.0
      %1271 = vmatmul.mubr.f32.gmra.mxu0 %v1181
      %v1272 = vpop.f32.mrf.mxu0
      %v1273 = vadd.f32 %v1166, %v1272
      %v1274 = vpop.f32.mrf.mxu0
      %1275 = vdwg.mxu0
      %vm1276 = vcmp.ge.f32.partialorder %v1253, 0.0
      %vm1277 = vcmp.ge.f32.partialorder %v1258, 0.0
      %vm1278 = vcmp.ge.f32.partialorder %v1263, 0.0
      %vm1279 = vcmp.ge.f32.partialorder %v1268, 0.0
      %vm1280 = vcmp.ge.f32.partialorder %v1273, 0.0
      %v1281 = vmul.f32 %v1253, 0.01
      %v1282 = vmul.f32 %v1258, 0.01
      %v1283 = vmul.f32 %v1263, 0.01
      %v1284 = vmul.f32 %v1268, 0.01
      %v1285 = vmul.f32 %v1273, 0.01
      %v1286 = vsel %vm1276, %v1253, %v1281
      %v1287 = vsel %vm1277, %v1258, %v1282
      %v1288 = vsel %vm1278, %v1263, %v1283
      %v1289 = vsel %vm1279, %v1268, %v1284
      %v1290 = vsel %vm1280, %v1273, %v1285
      %v1291 = vadd.f32 %v1286, %v139
      %v1292 = vadd.f32 %v1287, %v139
      %v1293 = vadd.f32 %v1288, %v139
      %v1294 = vadd.f32 %v1289, %v139
      %v1295 = vadd.f32 %v1290, %v139
      %v1296 = vsel %vm177, %v1291, -inf
      %1297 = vmax.xlane.f32.xlu0 %v1296
      %v1298 = vpop.xlane.xlu0 %1297
      %v1299 = vsel %vm177, %v1292, -inf
      %1300 = vmax.xlane.f32.xlu0 %v1299
      %v1301 = vpop.xlane.xlu0 %1300
      %v1302 = vsel %vm177, %v1293, -inf
      %1303 = vmax.xlane.f32.xlu0 %v1302
      %v1304 = vpop.xlane.xlu0 %1303
      %v1305 = vsel %vm177, %v1294, -inf
      %1306 = vmax.xlane.f32.xlu0 %v1305
      %v1307 = vpop.xlane.xlu0 %1306
      %v1308 = vsel %vm177, %v1295, -inf
      %1309 = vmax.xlane.f32.xlu0 %v1308
      %v1310 = vpop.xlane.xlu0 %1309
      %v1311 = vsub.f32 %v1291, %v1298
      %v1312 = vsub.f32 %v1292, %v1301
      %v1313 = vsub.f32 %v1293, %v1304
      %v1314 = vsub.f32 %v1294, %v1307
      %v1315 = vsub.f32 %v1295, %v1310
      %v1316 = vmul.f32 %v1311, 1.442695
      %v1317 = vpow.pop %v1316
      %v1318 = vmul.f32 %v1312, 1.442695
      %v1319 = vpow.pop %v1318
      %v1320 = vmul.f32 %v1313, 1.442695
      %v1321 = vpow.pop %v1320
      %v1322 = vmul.f32 %v1314, 1.442695
      %v1323 = vpow.pop %v1322
      %v1324 = vmul.f32 %v1315, 1.442695
      %v1325 = vpow.pop %v1324
      %v1326 = vmul.f32 %v1317, %v137
      %v1327 = vmul.f32 %v1319, %v137
      %v1328 = vmul.f32 %v1321, %v137
      %v1329 = vmul.f32 %v1323, %v137
      %v1330 = vmul.f32 %v1325, %v137
      %v1331 = vsel %vm177, %v1326, 0.0
      %1332 = vadd.xlane.f32.xlu0 %v1331
      %v1333 = vpop.xlane.xlu0 %1332
      %v1334 = vsel %vm177, %v1327, 0.0
      %1335 = vadd.xlane.f32.xlu0 %v1334
      %v1336 = vpop.xlane.xlu0 %1335
      %v1337 = vsel %vm177, %v1328, 0.0
      %1338 = vadd.xlane.f32.xlu0 %v1337
      %v1339 = vpop.xlane.xlu0 %1338
      %v1340 = vsel %vm177, %v1329, 0.0
      %1341 = vadd.xlane.f32.xlu0 %v1340
      %v1342 = vpop.xlane.xlu0 %1341
      %v1343 = vsel %vm177, %v1330, 0.0
      %1344 = vadd.xlane.f32.xlu0 %v1343
      %v1345 = vpop.xlane.xlu0 %1344
      %vm1346 = vcmp.eq.f32.partialorder %v1333, 0.0
      %vm1347 = vcmp.eq.f32.partialorder %v1336, 0.0
      %vm1348 = vcmp.eq.f32.partialorder %v1339, 0.0
      %vm1349 = vcmp.eq.f32.partialorder %v1342, 0.0
      %vm1350 = vcmp.eq.f32.partialorder %v1345, 0.0
      %v1351 = vsel %vm1346, 1.0, %v1333
      %v1352 = vsel %vm1347, 1.0, %v1336
      %v1353 = vsel %vm1348, 1.0, %v1339
      %v1354 = vsel %vm1349, 1.0, %v1342
      %v1355 = vsel %vm1350, 1.0, %v1345
      %v1356 = vrcp.pop %v1351
      %v1357 = vrcp.pop %v1352
      %v1358 = vrcp.pop %v1353
      %v1359 = vrcp.pop %v1354
      %v1360 = vrcp.pop %v1355
      %v1361 = vmul.f32 %v1326, %v1356
      %v1362 = vmul.f32 %v1327, %v1357
      %v1363 = vmul.f32 %v1328, %v1358
      %v1364 = vmul.f32 %v1329, %v1359
      %v1365 = vmul.f32 %v1330, %v1360
      %v1366 = vsel %vm177, %v1361, 0.0
      %v1367 = vsel %vm177, %v1362, 0.0
      %v1368 = vadd.f32 %v1366, %v1367
      %v1369 = vsel %vm177, %v1363, 0.0
      %v1370 = vadd.f32 %v1368, %v1369
      %v1371 = vsel %vm177, %v1364, 0.0
      %v1372 = vadd.f32 %v1370, %v1371
      %v1373 = vsel %vm177, %v1365, 0.0
      %v1374 = vadd.f32 %v1372, %v1373
      %v1375 = vrcp.pop 5.0
      %v1376 = vmul.f32 %v1374, %v1375
      %v1378 = vsel %vm177, %v1376, 0
      %1380 = vmatprep.subr.mxu0 0.0
      %1381 = vmatpush1.msra.mxu0 0.0
      %1382 = vmatprep.subr.mxu0 0.0
      %1383 = vmatpush1.msra.mxu0 0.0
      %1384 = vmatprep.subr.mxu0 0.0
      %1385 = vmatpush1.msra.mxu0 0.0
      %1386 = vmatprep.subr.mxu0 0.0
      %1387 = vmatpush1.msra.mxu0 0.0
      %1388 = vmatprep.subr.mxu0 0.0
      %1389 = vmatpush1.msra.mxu0 0.0
      %1390 = vmatprep.subr.mxu0 0.0
      %1391 = vmatpush1.msra.mxu0 0.0
      %1392 = vmatprep.subr.mxu0 0.0
      %1393 = vmatpush1.msra.mxu0 0.0
      %1394 = vmatprep.subr.mxu0 0.0
      %1395 = vmatpush1.msra.mxu0 0.0
      %1396 = vmatprep.subr.mxu0 0.0
      %1397 = vmatpush1.msra.mxu0 0.0
      %1398 = vmatprep.subr.mxu0 0.0
      %1399 = vmatpush1.msra.mxu0 0.0
      %1400 = vmatprep.subr.mxu0 0.0
      %1401 = vmatpush1.msra.mxu0 0.0
      %1402 = vmatprep.subr.mxu0 0.0
      %1403 = vmatpush1.msra.mxu0 0.0
      %1404 = vmatprep.subr.mxu0 0.0
      %1405 = vmatpush1.msra.mxu0 0.0
      %1406 = vmatprep.subr.mxu0 0.0
      %1407 = vmatpush1.msra.mxu0 0.0
      %1408 = vmatprep.subr.mxu0 0.0
      %1409 = vmatpush1.msra.mxu0 0.0
      %1410 = vmatprep.subr.mxu0 0.0
      %1411 = vmatpush1.msra.mxu0 %v1117
      %1412 = vmatprep.subr.mxu0 0.0
      %1413 = vmatpush2.msra.mxu0 0.0
      %1414 = vmatprep.subr.mxu0 0.0
      %1415 = vmatpush2.msra.mxu0 0.0
      %1416 = vmatprep.subr.mxu0 0.0
      %1417 = vmatpush2.msra.mxu0 0.0
      %1418 = vmatprep.subr.mxu0 0.0
      %1419 = vmatpush2.msra.mxu0 0.0
      %1420 = vmatprep.subr.mxu0 0.0
      %1421 = vmatpush2.msra.mxu0 0.0
      %1422 = vmatprep.subr.mxu0 0.0
      %1423 = vmatpush2.msra.mxu0 0.0
      %1424 = vmatprep.subr.mxu0 0.0
      %1425 = vmatpush2.msra.mxu0 0.0
      %1426 = vmatprep.subr.mxu0 0.0
      %1427 = vmatpush2.msra.mxu0 0.0
      %1428 = vmatprep.subr.mxu0 0.0
      %1429 = vmatpush2.msra.mxu0 0.0
      %1430 = vmatprep.subr.mxu0 0.0
      %1431 = vmatpush2.msra.mxu0 0.0
      %1432 = vmatprep.subr.mxu0 0.0
      %1433 = vmatpush2.msra.mxu0 0.0
      %1434 = vmatprep.subr.mxu0 0.0
      %1435 = vmatpush2.msra.mxu0 0.0
      %1436 = vmatprep.subr.mxu0 0.0
      %1437 = vmatpush2.msra.mxu0 0.0
      %1438 = vmatprep.subr.mxu0 0.0
      %1439 = vmatpush2.msra.mxu0 0.0
      %1440 = vmatprep.subr.mxu0 0.0
      %1441 = vmatpush2.msra.mxu0 0.0
      %1442 = vmatprep.subr.mxu0 0.0
      %1443 = vmatpush2.msra.mxu0 0.0
      %1444 = vmatprep.mubr.f32.mxu0 0.0
      %1445 = vmatmul.mubr.f32.gmra.mxu0 %v1378
      %v1446 = vpop.f32.mrf.mxu0
      %v1447 = vadd.f32 0.0, %v1446
      %v1448 = vpop.f32.mrf.mxu0
      %1449 = vdwg.mxu0
      %v1450 = vadd.f32 %v1117, %v1447
      %vm1451 = vcmp.gt.f32.partialorder %v1450, 0.0
      %v1452 = vmin.f32 %v1450, 0.0
      %v1453 = vmul.f32 %v1452, 1.442695
      %v1454 = vpow.pop %v1453
      %v1455 = vsub.f32 %v1454, 1.0
      %v1456 = vsel %vm1451, %v1450, %v1455
      %v1457 = vsel %vm334, %v1456, 0.0
      %v1458 = vrot.slane %v1457, 4
      %v1459 = vadd.f32 %v1457, %v1458
      %v1460 = vrot.slane %v1459, 2
      %v1461 = vadd.f32 %v1459, %v1460
      %v1462 = vrot.slane %v1461, 1
      %v1463 = vadd.f32 %v1461, %v1462
      %v1464 = vmul.f32 %v1463, 0.125
      %v1465 = vmul.f32 %v1464, %v175
      %vm1466 = vcmask 73728
      %v1467 = vsel %vm1466, %v1465, 0.0
      %1468 = vadd.xlane.f32.xlu0 %v1467
      %v1469 = vpop.xlane.xlu0 %1468
      %v1470 = vadd.f32 %v1469, %v176
      %1472 = vset.pattern.permute.xlu0 0
      %1473 = vperm.xlu0 %1472, %v1470
      %v1474 = vpop.permute.xlu0 %1473
      %1476 = vst [vmem:[%s136] sm:$0x1] %v1474
      %p1477 = scmp.lt.s32.totalorder %s13, 7
      %s1478 = scalar_select %p1477, %s13, 7
      %s1479 = scalar_lea.vmem %s2, %s1478
      // Predicated region
      $region29: #{gat_forward.1} parent=27 // pred_check
        %p1480 = pneg %p78
      $region30: #{gat_forward.1} parent=27 // pred_check_branch
        %1482 = sbr.rel (%p1480) target = $region32
      $region31: #{gat_forward.1} parent=27 // pred_region
        _
      $region32: #{gat_forward.1} parent=27 // pred_fallthru
        _
    $region28: #{gat_forward.1} parent=5 // pred_fallthru
      _
    %p1483 = scmp.le.s32.totalorder 2, %s8
    // Predicated region
    $region33: #{gat_forward.1} parent=5 // pred_check
      %p1484 = pneg %p1483
    $region34: #{gat_forward.1} parent=5 // pred_check_branch
      %1486 = sbr.rel (%p1484) target = $region36
    $region35: #{gat_forward.1} parent=5 // pred_region
      %s1487 = ssub.s32 %s8, 2
      // Predicated region
      $region37: #{gat_forward.1} parent=35 // pred_check
        %p1488 = pneg %p84
      $region38: #{gat_forward.1} parent=35 // pred_check_branch
        %1490 = sbr.rel (%p1488) target = $region40
      $region39: #{gat_forward.1} parent=35 // pred_region
        %p1491 = scmp.lt.s32.totalorder %s14, 7
        %s1492 = scalar_select %p1491, %s14, 7
        %s1493 = scalar_lea.vmem %s2, %s1492
      $region40: #{gat_forward.1} parent=35 // pred_fallthru
        _
    $region36: #{gat_forward.1} parent=5 // pred_fallthru
      _
  $region6: #{gat_forward.1} parent=0 // loop_footer
    %s12 = sadd.s32 1, %s8
  $region7: #{gat_forward.1} parent=0 // loop_footer_branch
    %7 = sbr.rel target = $region3
  $region8: #{gat_forward.1} parent=0 // loop_exit
    _

</llo_original>
